<compile_context>
chip_gen: v5e
topology: v5e:2x2
jax: 0.10.0
libtpu: 0.0.40
codegen_flags: <defaults>
</compile_context>

<pallas_src>
import jax
import jax.numpy as jnp
from jax import lax
from jax.experimental import pallas as pl
from jax.experimental.pallas import tpu as pltpu  # noqa: F401  (kept for TPU-specific params if needed)

# ---------------- mini-BERT config (small, synthetic weights) ----------------
VOCAB = 50
HIDDEN = 32
N_LAYERS = 2
N_HEADS = 4
HEAD_DIM = HIDDEN // N_HEADS
INTERMEDIATE = 64
MAX_POS = 16
N_CLASSES = 7
LN_EPS = 1e-12
LOGIT_PAD = 128          # lane-dense logits store width


# ----------------------------- in-kernel helpers ------------------------------
def _layernorm(y, g, b):
    mean = jnp.mean(y, axis=-1, keepdims=True)
    cent = y - mean
    var = jnp.mean(cent * cent, axis=-1, keepdims=True)
    return cent * lax.rsqrt(var + LN_EPS) * g + b


def _gelu(y):  # exact erf-based GELU, as in HF BERT (kept in f32)
    return 0.5 * y * (1.0 + lax.erf(y * 0.7071067811865476))


# ------------------------------ fused kernel ----------------------------------
def _bert_forward_kernel(
    ids_ref,                 # (B*S, 1)  int32 token ids
    word_emb_ref,            # (VOCAB, H) bf16
    static_emb_ref,          # (B*S, H)  f32  pos + token-type-0 embeddings (pre-tiled)
    bias_ref,                # (B, N_HEADS*S) f32 additive key-mask bias, tiled over heads
    head_mask_ref,           # (N_HEADS*S, H) f32 block mask (row r keeps head r//S columns)
    seg_ones_ref,            # (N_HEADS*S, N_HEADS*S) f32 block-diagonal ones (segment sums)
    emb_g_ref, emb_b_ref,    # (1, H) f32
    wq_ref, wk_ref, wv_ref,  # (L, H, H) bf16
    bq_ref, bk_ref, bv_ref,  # (L, 1, H) f32
    wo_ref, bo_ref,          # (L, H, H) bf16 / (L, 1, H) f32
    ln1g_ref, ln1b_ref,      # (L, 1, H) f32
    w1_ref, b1_ref,          # (L, H, I) bf16 / (L, 1, I) f32
    w2_ref, b2_ref,          # (L, I, H) bf16 / (L, 1, H) f32
    ln2g_ref, ln2b_ref,      # (L, 1, H) f32
    poolw_ref, poolb_ref,    # (H, H) bf16 / (1, H) f32
    clsw_ref, clsb_ref,      # (H, LOGIT_PAD) bf16 / (1, LOGIT_PAD) f32
    logits_ref,              # (B, LOGIT_PAD) f32 output
):
    f32 = jnp.float32
    bf16 = jnp.bfloat16

    BS = ids_ref.shape[0]
    B = bias_ref.shape[0]
    S = bias_ref.shape[1] // N_HEADS
    scale = 1.0 / (HEAD_DIM ** 0.5)

    # ------------- embeddings: one-hot gather on the MXU + LayerNorm -------------
    ids = ids_ref[...]                                                  # (BS, 1)
    vocab_iota = lax.broadcasted_iota(jnp.int32, (BS, VOCAB), 1)
    onehot = jnp.where(ids == vocab_iota, 1.0, 0.0).astype(bf16)        # (BS, VOCAB)
    word = jnp.dot(onehot, word_emb_ref[...], preferred_element_type=f32)
    x = _layernorm(word + static_emb_ref[...], emb_g_ref[...], emb_b_ref[...])   # (BS, H)

    head_mask = head_mask_ref[...]                                       # (NH*S, H)
    seg_ones = seg_ones_ref[...]                                         # (NH*S, NH*S)
    # Hoisted once (not per layer): per-batch additive bias broadcast to (S, NH*S).
    bias_all = bias_ref[...]
    bias_full = [jnp.broadcast_to(bias_all[b:b + 1, :], (S, N_HEADS * S))
                 for b in range(B)]

    for l in range(N_LAYERS):                                            # static unroll
        # ------------------------- self-attention block -------------------------
        xb = x.astype(bf16)                                              # cast once/layer
        q = jnp.dot(xb, wq_ref[l], preferred_element_type=f32) + bq_ref[l]   # (BS, H)
        k = jnp.dot(xb, wk_ref[l], preferred_element_type=f32) + bk_ref[l]
        v = jnp.dot(xb, wv_ref[l], preferred_element_type=f32) + bv_ref[l]

        ctx_parts = []
        for b in range(B):        # static per-batch loop: attention must not mix batches
            rows = slice(b * S, (b + 1) * S)
            q_b, k_b, v_b = q[rows, :], k[rows, :], v[rows, :]           # (S, H)

            # All heads in one matmul: block h of k_stack is K restricted to head h.
            k_stack = jnp.tile(k_b, (N_HEADS, 1)) * head_mask            # (NH*S, H)
            s = lax.dot_general(q_b.astype(bf16), k_stack.astype(bf16),
                                (((1,), (1,)), ((), ())),
                                preferred_element_type=f32) * scale      # (S, NH*S)
            s = s + bias_full[b]

            # Per-head softmax; subtracting the shared per-row max is exact because
            # the same constant cancels in each segment's numerator and denominator.
            m = jnp.max(s, axis=-1, keepdims=True)
            p = jnp.exp(s - m)                                           # (S, NH*S)
            denom = jnp.dot(p, seg_ones, preferred_element_type=f32)     # per-segment sums
            p = p / denom                                                # exact normalize

            v_stack = jnp.tile(v_b, (N_HEADS, 1)) * head_mask            # (NH*S, H)
            ctx_parts.append(jnp.dot(p.astype(bf16), v_stack.astype(bf16),
                                     preferred_element_type=f32))        # (S, H)

        ctx = jnp.concatenate(ctx_parts, axis=0)                          # (BS, H)
        attn = jnp.dot(ctx.astype(bf16), wo_ref[l],
                       preferred_element_type=f32) + bo_ref[l]
        x = _layernorm(attn + x, ln1g_ref[l], ln1b_ref[l])

        # ----------------------------- feed-forward -----------------------------
        h1 = _gelu(jnp.dot(x.astype(bf16), w1_ref[l],
                           preferred_element_type=f32) + b1_ref[l])
        h2 = jnp.dot(h1.astype(bf16), w2_ref[l],
                     preferred_element_type=f32) + b2_ref[l]
        x = _layernorm(h2 + x, ln2g_ref[l], ln2b_ref[l])

    # ----------------- pooler (tanh on [CLS]) + classifier (padded) -----------------
    cls = jnp.concatenate([x[b * S:b * S + 1, :] for b in range(B)], axis=0)   # (B, H)
    pooled = jnp.tanh(jnp.dot(cls.astype(bf16), poolw_ref[...],
                              preferred_element_type=f32) + poolb_ref[...])
    logits = jnp.dot(pooled.astype(bf16), clsw_ref[...],
                     preferred_element_type=f32) + clsb_ref[...]               # (B, 128)
    logits_ref[...] = logits.astype(logits_ref.dtype)


# --------------------------- deterministic params ----------------------------
def make_params(seed=0):
    base = jax.random.PRNGKey(seed)
    counter = [0]

    def nrm(shape, scale=0.02):
        counter[0] += 1
        return (scale * jax.random.normal(jax.random.fold_in(base, counter[0]),
                                          shape)).astype(jnp.float32)

    zeros = lambda s: jnp.zeros(s, jnp.float32)
    ones = lambda s: jnp.ones(s, jnp.float32)

    params = dict(
        word_emb=nrm((VOCAB, HIDDEN)),
        pos_emb=nrm((MAX_POS, HIDDEN)),
        type_emb=nrm((2, HIDDEN)),
        emb_ln_g=ones((HIDDEN,)), emb_ln_b=zeros((HIDDEN,)),
        layers=[],
        pool_w=nrm((HIDDEN, HIDDEN)), pool_b=zeros((HIDDEN,)),
        cls_w=nrm((HIDDEN, N_CLASSES)), cls_b=zeros((N_CLASSES,)),
    )
    for _ in range(N_LAYERS):
        params["layers"].append(dict(
            wq=nrm((HIDDEN, HIDDEN)), bq=zeros((HIDDEN,)),
            wk=nrm((HIDDEN, HIDDEN)), bk=zeros((HIDDEN,)),
            wv=nrm((HIDDEN, HIDDEN)), bv=zeros((HIDDEN,)),
            wo=nrm((HIDDEN, HIDDEN)), bo=zeros((HIDDEN,)),
            ln1_g=ones((HIDDEN,)), ln1_b=zeros((HIDDEN,)),
            w1=nrm((HIDDEN, INTERMEDIATE)), b1=zeros((INTERMEDIATE,)),
            w2=nrm((INTERMEDIATE, HIDDEN)), b2=zeros((HIDDEN,)),
            ln2_g=ones((HIDDEN,)), ln2_b=zeros((HIDDEN,)),
        ))
    return params


# ------------------------------ forward pass ----------------------------------
def custom_bert_forward(params, input_ids, attention_mask):
    B, S = input_ids.shape
    BS = B * S
    f32, bf16 = jnp.float32, jnp.bfloat16
    layers = params["layers"]

    ids = input_ids.reshape(BS, 1).astype(jnp.int32)

    # pos + token-type embeddings are data-independent; pre-sum and tile (tiny).
    # TODO(synk): token_type_ids are hard-coded to type 0, as in the reference usage.
    static_emb = jnp.tile(params["pos_emb"][:S] + params["type_emb"][0][None, :],
                          (B, 1)).astype(f32)                                   # (BS, H)

    # Additive key-mask bias (HF-style), tiled over heads -> (B, N_HEADS*S).
    mask_bias = ((1.0 - attention_mask.astype(f32)) * (-1e9))                   # (B, S)
    mask_bias = jnp.tile(mask_bias, (1, N_HEADS))

    # Head block mask / block-diagonal segment-sum matrix (constants).
    r = jnp.arange(N_HEADS * S)
    c = jnp.arange(HIDDEN)
    head_mask = ((c[None, :] // HEAD_DIM) == (r[:, None] // S)).astype(f32)     # (NH*S, H)
    seg_ones = ((r[:, None] // S) == (r[None, :] // S)).astype(f32)             # (NH*S, NH*S)

    # Per-layer weights stacked along a leading layer axis; matmul weights in bf16.
    stack_w = lambda name: jnp.stack([lp[name] for lp in layers]).astype(bf16)
    stack_b = lambda name, n: jnp.stack([lp[name].reshape(1, n) for lp in layers]).astype(f32)

    # Lane-dense classifier: pad the class dim to 128 lanes (sliced back below).
    cls_w_pad = jnp.zeros((HIDDEN, LOGIT_PAD), f32).at[:, :N_CLASSES].set(
        params["cls_w"]).astype(bf16)
    cls_b_pad = jnp.zeros((1, LOGIT_PAD), f32).at[:, :N_CLASSES].set(
        params["cls_b"][None, :])

    logits_pad = pl.pallas_call(
        _bert_forward_kernel,
        out_shape=jax.ShapeDtypeStruct((B, LOGIT_PAD), jnp.float32),
    )(
        ids,
        params["word_emb"].astype(bf16),
        static_emb,
        mask_bias,
        head_mask,
        seg_ones,
        params["emb_ln_g"].reshape(1, HIDDEN), params["emb_ln_b"].reshape(1, HIDDEN),
        stack_w("wq"), stack_w("wk"), stack_w("wv"),
        stack_b("bq", HIDDEN), stack_b("bk", HIDDEN), stack_b("bv", HIDDEN),
        stack_w("wo"), stack_b("bo", HIDDEN),
        stack_b("ln1_g", HIDDEN), stack_b("ln1_b", HIDDEN),
        stack_w("w1"), stack_b("b1", INTERMEDIATE),
        stack_w("w2"), stack_b("b2", HIDDEN),
        stack_b("ln2_g", HIDDEN), stack_b("ln2_b", HIDDEN),
        params["pool_w"].astype(bf16), params["pool_b"].reshape(1, HIDDEN),
        cls_w_pad, cls_b_pad,
    )
    return logits_pad[:, :N_CLASSES]                                            # (B, 7)


# ----------------------------------- main -------------------------------------
if __name__ == "__main__":
    B, S = 2, 8
    key = jax.random.PRNGKey(0)
    params = make_params(seed=0)

    input_ids = jax.random.randint(jax.random.fold_in(key, 1001), (B, S), 0, VOCAB)
    attention_mask = jnp.ones((B, S), dtype=jnp.int32).at[1, 6:].set(0)  # some padding

    fwd = jax.jit(custom_bert_forward)
    logits = jax.block_until_ready(fwd(params, input_ids, attention_mask))
    assert logits.shape == (B, N_CLASSES)
    assert bool(jnp.all(jnp.isfinite(logits)))
    print("KERNEL_OK")
</pallas_src>

<mosaic_0001>
module attributes {stable_mosaic.version = 11 : i64} {
  func.func @_bert_forward_kernel(%arg0: memref<16x1xi32, #tpu.memory_space<vmem>>, %arg1: memref<50x32xbf16, #tpu.memory_space<vmem>>, %arg2: memref<16x32xf32, #tpu.memory_space<vmem>>, %arg3: memref<2x32xf32, #tpu.memory_space<vmem>>, %arg4: memref<32x32xf32, #tpu.memory_space<vmem>>, %arg5: memref<32x32xf32, #tpu.memory_space<vmem>>, %arg6: memref<1x32xf32, #tpu.memory_space<vmem>>, %arg7: memref<1x32xf32, #tpu.memory_space<vmem>>, %arg8: memref<2x32x32xbf16, #tpu.memory_space<vmem>>, %arg9: memref<2x32x32xbf16, #tpu.memory_space<vmem>>, %arg10: memref<2x32x32xbf16, #tpu.memory_space<vmem>>, %arg11: memref<2x1x32xf32, #tpu.memory_space<vmem>>, %arg12: memref<2x1x32xf32, #tpu.memory_space<vmem>>, %arg13: memref<2x1x32xf32, #tpu.memory_space<vmem>>, %arg14: memref<2x32x32xbf16, #tpu.memory_space<vmem>>, %arg15: memref<2x1x32xf32, #tpu.memory_space<vmem>>, %arg16: memref<2x1x32xf32, #tpu.memory_space<vmem>>, %arg17: memref<2x1x32xf32, #tpu.memory_space<vmem>>, %arg18: memref<2x32x64xbf16, #tpu.memory_space<vmem>>, %arg19: memref<2x1x64xf32, #tpu.memory_space<vmem>>, %arg20: memref<2x64x32xbf16, #tpu.memory_space<vmem>>, %arg21: memref<2x1x32xf32, #tpu.memory_space<vmem>>, %arg22: memref<2x1x32xf32, #tpu.memory_space<vmem>>, %arg23: memref<2x1x32xf32, #tpu.memory_space<vmem>>, %arg24: memref<32x32xbf16, #tpu.memory_space<vmem>>, %arg25: memref<1x32xf32, #tpu.memory_space<vmem>>, %arg26: memref<32x128xbf16, #tpu.memory_space<vmem>>, %arg27: memref<1x128xf32, #tpu.memory_space<vmem>>, %arg28: memref<2x128xf32, #tpu.memory_space<vmem>>) attributes {dimension_semantics = [], scalar_prefetch = 0 : i64, scratch_operands = 0 : i64, tpu.core_type = #tpu.core_type<tc>} {
    %c0 = arith.constant 0 : index
    %c0_0 = arith.constant 0 : index
    %0 = vector.load %arg0[%c0, %c0_0] : memref<16x1xi32, #tpu.memory_space<vmem>>, vector<16x1xi32>
    %1 = tpu.iota {dimensions = array<i32: 1>} : vector<16x50xi32>
    %2 = vector.broadcast %0 : vector<16x1xi32> to vector<16x50xi32>
    %3 = arith.cmpi eq, %2, %1 : vector<16x50xi32>
    %cst = arith.constant 1.000000e+00 : f32
    %cst_1 = arith.constant 0.000000e+00 : f32
    %4 = vector.broadcast %cst : f32 to vector<16x50xf32>
    %5 = vector.broadcast %cst_1 : f32 to vector<16x50xf32>
    %6 = arith.select %3, %4, %5 : vector<16x50xi1>, vector<16x50xf32>
    %7 = arith.truncf %6 : vector<16x50xf32> to vector<16x50xbf16>
    %c0_2 = arith.constant 0 : index
    %c0_3 = arith.constant 0 : index
    %8 = vector.load %arg1[%c0_2, %c0_3] : memref<50x32xbf16, #tpu.memory_space<vmem>>, vector<50x32xbf16>
    %cst_4 = arith.constant dense<0.000000e+00> : vector<16x32xf32>
    %9 = tpu.matmul %7, %8, %cst_4 {dimension_numbers = #tpu.dot_dimension_numbers<[1], [0], [0], [1], [0, 0, 1, 1], [], []>} : vector<16x50xbf16>, vector<50x32xbf16>, vector<16x32xf32> -> vector<16x32xf32>
    %c0_5 = arith.constant 0 : index
    %c0_6 = arith.constant 0 : index
    %10 = vector.load %arg2[%c0_5, %c0_6] : memref<16x32xf32, #tpu.memory_space<vmem>>, vector<16x32xf32>
    %11 = arith.addf %9, %10 : vector<16x32xf32>
    %c0_7 = arith.constant 0 : index
    %c0_8 = arith.constant 0 : index
    %12 = vector.load %arg6[%c0_7, %c0_8] : memref<1x32xf32, #tpu.memory_space<vmem>>, vector<1x32xf32>
    %c0_9 = arith.constant 0 : index
    %c0_10 = arith.constant 0 : index
    %13 = vector.load %arg7[%c0_9, %c0_10] : memref<1x32xf32, #tpu.memory_space<vmem>>, vector<1x32xf32>
    %cst_11 = arith.constant dense<0.000000e+00> : vector<16xf32>
    %14 = vector.multi_reduction <add>, %11, %cst_11 [1] : vector<16x32xf32> to vector<16xf32>
    %15 = vector.shape_cast %14 : vector<16xf32> to vector<16x1xf32>
    %cst_12 = arith.constant 3.200000e+01 : f32
    %16 = vector.broadcast %cst_12 : f32 to vector<16x1xf32>
    %17 = arith.divf %15, %16 : vector<16x1xf32>
    %18 = vector.broadcast %17 : vector<16x1xf32> to vector<16x32xf32>
    %19 = arith.subf %11, %18 : vector<16x32xf32>
    %20 = arith.mulf %19, %19 : vector<16x32xf32>
    %cst_13 = arith.constant dense<0.000000e+00> : vector<16xf32>
    %21 = vector.multi_reduction <add>, %20, %cst_13 [1] : vector<16x32xf32> to vector<16xf32>
    %22 = vector.shape_cast %21 : vector<16xf32> to vector<16x1xf32>
    %cst_14 = arith.constant 3.200000e+01 : f32
    %23 = vector.broadcast %cst_14 : f32 to vector<16x1xf32>
    %24 = arith.divf %22, %23 : vector<16x1xf32>
    %cst_15 = arith.constant 9.99999996E-13 : f32
    %25 = vector.broadcast %cst_15 : f32 to vector<16x1xf32>
    %26 = arith.addf %24, %25 : vector<16x1xf32>
    %27 = math.rsqrt %26 : vector<16x1xf32>
    %28 = vector.broadcast %27 : vector<16x1xf32> to vector<16x32xf32>
    %29 = arith.mulf %19, %28 : vector<16x32xf32>
    %30 = vector.broadcast %12 : vector<1x32xf32> to vector<16x32xf32>
    %31 = arith.mulf %29, %30 : vector<16x32xf32>
    %32 = vector.broadcast %13 : vector<1x32xf32> to vector<16x32xf32>
    %33 = arith.addf %31, %32 : vector<16x32xf32>
    %c0_16 = arith.constant 0 : index
    %c0_17 = arith.constant 0 : index
    %34 = vector.load %arg4[%c0_16, %c0_17] : memref<32x32xf32, #tpu.memory_space<vmem>>, vector<32x32xf32>
    %c0_18 = arith.constant 0 : index
    %c0_19 = arith.constant 0 : index
    %35 = vector.load %arg5[%c0_18, %c0_19] : memref<32x32xf32, #tpu.memory_space<vmem>>, vector<32x32xf32>
    %c0_20 = arith.constant 0 : index
    %c0_21 = arith.constant 0 : index
    %36 = vector.load %arg3[%c0_20, %c0_21] : memref<2x32xf32, #tpu.memory_space<vmem>>, vector<2x32xf32>
    %37 = vector.extract_strided_slice %36 {offsets = [0, 0], sizes = [1, 32], strides = [1, 1]} : vector<2x32xf32> to vector<1x32xf32>
    %38 = vector.shape_cast %37 : vector<1x32xf32> to vector<1x32xf32>
    %39 = vector.broadcast %38 : vector<1x32xf32> to vector<8x32xf32>
    %40 = vector.extract_strided_slice %36 {offsets = [1, 0], sizes = [1, 32], strides = [1, 1]} : vector<2x32xf32> to vector<1x32xf32>
    %41 = vector.shape_cast %40 : vector<1x32xf32> to vector<1x32xf32>
    %42 = vector.broadcast %41 : vector<1x32xf32> to vector<8x32xf32>
    %43 = arith.truncf %33 : vector<16x32xf32> to vector<16x32xbf16>
    %c0_22 = arith.constant 0 : index
    %c0_23 = arith.constant 0 : index
    %c0_24 = arith.constant 0 : index
    %44 = vector.load %arg8[%c0_22, %c0_23, %c0_24] : memref<2x32x32xbf16, #tpu.memory_space<vmem>>, vector<1x32x32xbf16>
    %45 = vector.shape_cast %44 : vector<1x32x32xbf16> to vector<32x32xbf16>
    %cst_25 = arith.constant dense<0.000000e+00> : vector<16x32xf32>
    %46 = tpu.matmul %43, %45, %cst_25 {dimension_numbers = #tpu.dot_dimension_numbers<[1], [0], [0], [1], [0, 0, 1, 1], [], []>} : vector<16x32xbf16>, vector<32x32xbf16>, vector<16x32xf32> -> vector<16x32xf32>
    %c0_26 = arith.constant 0 : index
    %c0_27 = arith.constant 0 : index
    %c0_28 = arith.constant 0 : index
    %47 = vector.load %arg11[%c0_26, %c0_27, %c0_28] : memref<2x1x32xf32, #tpu.memory_space<vmem>>, vector<1x1x32xf32>
    %48 = vector.shape_cast %47 : vector<1x1x32xf32> to vector<1x32xf32>
    %49 = vector.broadcast %48 : vector<1x32xf32> to vector<16x32xf32>
    %50 = arith.addf %46, %49 : vector<16x32xf32>
    %c0_29 = arith.constant 0 : index
    %c0_30 = arith.constant 0 : index
    %c0_31 = arith.constant 0 : index
    %51 = vector.load %arg9[%c0_29, %c0_30, %c0_31] : memref<2x32x32xbf16, #tpu.memory_space<vmem>>, vector<1x32x32xbf16>
    %52 = vector.shape_cast %51 : vector<1x32x32xbf16> to vector<32x32xbf16>
    %cst_32 = arith.constant dense<0.000000e+00> : vector<16x32xf32>
    %53 = tpu.matmul %43, %52, %cst_32 {dimension_numbers = #tpu.dot_dimension_numbers<[1], [0], [0], [1], [0, 0, 1, 1], [], []>} : vector<16x32xbf16>, vector<32x32xbf16>, vector<16x32xf32> -> vector<16x32xf32>
    %c0_33 = arith.constant 0 : index
    %c0_34 = arith.constant 0 : index
    %c0_35 = arith.constant 0 : index
    %54 = vector.load %arg12[%c0_33, %c0_34, %c0_35] : memref<2x1x32xf32, #tpu.memory_space<vmem>>, vector<1x1x32xf32>
    %55 = vector.shape_cast %54 : vector<1x1x32xf32> to vector<1x32xf32>
    %56 = vector.broadcast %55 : vector<1x32xf32> to vector<16x32xf32>
    %57 = arith.addf %53, %56 : vector<16x32xf32>
    %c0_36 = arith.constant 0 : index
    %c0_37 = arith.constant 0 : index
    %c0_38 = arith.constant 0 : index
    %58 = vector.load %arg10[%c0_36, %c0_37, %c0_38] : memref<2x32x32xbf16, #tpu.memory_space<vmem>>, vector<1x32x32xbf16>
    %59 = vector.shape_cast %58 : vector<1x32x32xbf16> to vector<32x32xbf16>
    %cst_39 = arith.constant dense<0.000000e+00> : vector<16x32xf32>
    %60 = tpu.matmul %43, %59, %cst_39 {dimension_numbers = #tpu.dot_dimension_numbers<[1], [0], [0], [1], [0, 0, 1, 1], [], []>} : vector<16x32xbf16>, vector<32x32xbf16>, vector<16x32xf32> -> vector<16x32xf32>
    %c0_40 = arith.constant 0 : index
    %c0_41 = arith.constant 0 : index
    %c0_42 = arith.constant 0 : index
    %61 = vector.load %arg13[%c0_40, %c0_41, %c0_42] : memref<2x1x32xf32, #tpu.memory_space<vmem>>, vector<1x1x32xf32>
    %62 = vector.shape_cast %61 : vector<1x1x32xf32> to vector<1x32xf32>
    %63 = vector.broadcast %62 : vector<1x32xf32> to vector<16x32xf32>
    %64 = arith.addf %60, %63 : vector<16x32xf32>
    %65 = vector.extract_strided_slice %50 {offsets = [0, 0], sizes = [8, 32], strides = [1, 1]} : vector<16x32xf32> to vector<8x32xf32>
    %66 = vector.extract_strided_slice %57 {offsets = [0, 0], sizes = [8, 32], strides = [1, 1]} : vector<16x32xf32> to vector<8x32xf32>
    %67 = vector.extract_strided_slice %64 {offsets = [0, 0], sizes = [8, 32], strides = [1, 1]} : vector<16x32xf32> to vector<8x32xf32>
    %68 = tpu.concatenate %66, %66, %66, %66 in 0 : vector<8x32xf32>, vector<8x32xf32>, vector<8x32xf32>, vector<8x32xf32> -> vector<32x32xf32>
    %69 = arith.mulf %68, %34 : vector<32x32xf32>
    %70 = arith.truncf %65 : vector<8x32xf32> to vector<8x32xbf16>
    %71 = arith.truncf %69 : vector<32x32xf32> to vector<32x32xbf16>
    %cst_43 = arith.constant dense<0.000000e+00> : vector<8x32xf32>
    %72 = tpu.matmul %70, %71, %cst_43 {dimension_numbers = #tpu.dot_dimension_numbers<[1], [1], [0], [0], [0, 0, 1, 0], [], []>} : vector<8x32xbf16>, vector<32x32xbf16>, vector<8x32xf32> -> vector<8x32xf32>
    %cst_44 = arith.constant 0.353553385 : f32
    %73 = vector.broadcast %cst_44 : f32 to vector<8x32xf32>
    %74 = arith.mulf %72, %73 : vector<8x32xf32>
    %75 = arith.addf %74, %39 : vector<8x32xf32>
    %cst_45 = arith.constant dense<0xFF800000> : vector<8xf32>
    %76 = vector.multi_reduction <maximumf>, %75, %cst_45 [1] : vector<8x32xf32> to vector<8xf32>
    %77 = vector.shape_cast %76 : vector<8xf32> to vector<8x1xf32>
    %78 = vector.broadcast %77 : vector<8x1xf32> to vector<8x32xf32>
    %79 = arith.subf %75, %78 : vector<8x32xf32>
    %80 = math.exp %79 : vector<8x32xf32>
    %cst_46 = arith.constant dense<0.000000e+00> : vector<8x32xf32>
    %81 = tpu.matmul %80, %35, %cst_46 {dimension_numbers = #tpu.dot_dimension_numbers<[1], [0], [0], [1], [0, 0, 1, 1], [], []>} : vector<8x32xf32>, vector<32x32xf32>, vector<8x32xf32> -> vector<8x32xf32>
    %82 = arith.divf %80, %81 : vector<8x32xf32>
    %83 = tpu.concatenate %67, %67, %67, %67 in 0 : vector<8x32xf32>, vector<8x32xf32>, vector<8x32xf32>, vector<8x32xf32> -> vector<32x32xf32>
    %84 = arith.mulf %83, %34 : vector<32x32xf32>
    %85 = arith.truncf %82 : vector<8x32xf32> to vector<8x32xbf16>
    %86 = arith.truncf %84 : vector<32x32xf32> to vector<32x32xbf16>
    %cst_47 = arith.constant dense<0.000000e+00> : vector<8x32xf32>
    %87 = tpu.matmul %85, %86, %cst_47 {dimension_numbers = #tpu.dot_dimension_numbers<[1], [0], [0], [1], [0, 0, 1, 1], [], []>} : vector<8x32xbf16>, vector<32x32xbf16>, vector<8x32xf32> -> vector<8x32xf32>
    %88 = vector.extract_strided_slice %50 {offsets = [8, 0], sizes = [8, 32], strides = [1, 1]} : vector<16x32xf32> to vector<8x32xf32>
    %89 = vector.extract_strided_slice %57 {offsets = [8, 0], sizes = [8, 32], strides = [1, 1]} : vector<16x32xf32> to vector<8x32xf32>
    %90 = vector.extract_strided_slice %64 {offsets = [8, 0], sizes = [8, 32], strides = [1, 1]} : vector<16x32xf32> to vector<8x32xf32>
    %91 = tpu.concatenate %89, %89, %89, %89 in 0 : vector<8x32xf32>, vector<8x32xf32>, vector<8x32xf32>, vector<8x32xf32> -> vector<32x32xf32>
    %92 = arith.mulf %91, %34 : vector<32x32xf32>
    %93 = arith.truncf %88 : vector<8x32xf32> to vector<8x32xbf16>
    %94 = arith.truncf %92 : vector<32x32xf32> to vector<32x32xbf16>
    %cst_48 = arith.constant dense<0.000000e+00> : vector<8x32xf32>
    %95 = tpu.matmul %93, %94, %cst_48 {dimension_numbers = #tpu.dot_dimension_numbers<[1], [1], [0], [0], [0, 0, 1, 0], [], []>} : vector<8x32xbf16>, vector<32x32xbf16>, vector<8x32xf32> -> vector<8x32xf32>
    %cst_49 = arith.constant 0.353553385 : f32
    %96 = vector.broadcast %cst_49 : f32 to vector<8x32xf32>
    %97 = arith.mulf %95, %96 : vector<8x32xf32>
    %98 = arith.addf %97, %42 : vector<8x32xf32>
    %cst_50 = arith.constant dense<0xFF800000> : vector<8xf32>
    %99 = vector.multi_reduction <maximumf>, %98, %cst_50 [1] : vector<8x32xf32> to vector<8xf32>
    %100 = vector.shape_cast %99 : vector<8xf32> to vector<8x1xf32>
    %101 = vector.broadcast %100 : vector<8x1xf32> to vector<8x32xf32>
    %102 = arith.subf %98, %101 : vector<8x32xf32>
    %103 = math.exp %102 : vector<8x32xf32>
    %cst_51 = arith.constant dense<0.000000e+00> : vector<8x32xf32>
    %104 = tpu.matmul %103, %35, %cst_51 {dimension_numbers = #tpu.dot_dimension_numbers<[1], [0], [0], [1], [0, 0, 1, 1], [], []>} : vector<8x32xf32>, vector<32x32xf32>, vector<8x32xf32> -> vector<8x32xf32>
    %105 = arith.divf %103, %104 : vector<8x32xf32>
    %106 = tpu.concatenate %90, %90, %90, %90 in 0 : vector<8x32xf32>, vector<8x32xf32>, vector<8x32xf32>, vector<8x32xf32> -> vector<32x32xf32>
    %107 = arith.mulf %106, %34 : vector<32x32xf32>
    %108 = arith.truncf %105 : vector<8x32xf32> to vector<8x32xbf16>
    %109 = arith.truncf %107 : vector<32x32xf32> to vector<32x32xbf16>
    %cst_52 = arith.constant dense<0.000000e+00> : vector<8x32xf32>
    %110 = tpu.matmul %108, %109, %cst_52 {dimension_numbers = #tpu.dot_dimension_numbers<[1], [0], [0], [1], [0, 0, 1, 1], [], []>} : vector<8x32xbf16>, vector<32x32xbf16>, vector<8x32xf32> -> vector<8x32xf32>
    %111 = tpu.concatenate %87, %110 in 0 : vector<8x32xf32>, vector<8x32xf32> -> vector<16x32xf32>
    %112 = arith.truncf %111 : vector<16x32xf32> to vector<16x32xbf16>
    %c0_53 = arith.constant 0 : index
    %c0_54 = arith.constant 0 : index
    %c0_55 = arith.constant 0 : index
    %113 = vector.load %arg14[%c0_53, %c0_54, %c0_55] : memref<2x32x32xbf16, #tpu.memory_space<vmem>>, vector<1x32x32xbf16>
    %114 = vector.shape_cast %113 : vector<1x32x32xbf16> to vector<32x32xbf16>
    %cst_56 = arith.constant dense<0.000000e+00> : vector<16x32xf32>
    %115 = tpu.matmul %112, %114, %cst_56 {dimension_numbers = #tpu.dot_dimension_numbers<[1], [0], [0], [1], [0, 0, 1, 1], [], []>} : vector<16x32xbf16>, vector<32x32xbf16>, vector<16x32xf32> -> vector<16x32xf32>
    %c0_57 = arith.constant 0 : index
    %c0_58 = arith.constant 0 : index
    %c0_59 = arith.constant 0 : index
    %116 = vector.load %arg15[%c0_57, %c0_58, %c0_59] : memref<2x1x32xf32, #tpu.memory_space<vmem>>, vector<1x1x32xf32>
    %117 = vector.shape_cast %116 : vector<1x1x32xf32> to vector<1x32xf32>
    %118 = vector.broadcast %117 : vector<1x32xf32> to vector<16x32xf32>
    %119 = arith.addf %115, %118 : vector<16x32xf32>
    %120 = arith.addf %119, %33 : vector<16x32xf32>
    %c0_60 = arith.constant 0 : index
    %c0_61 = arith.constant 0 : index
    %c0_62 = arith.constant 0 : index
    %121 = vector.load %arg16[%c0_60, %c0_61, %c0_62] : memref<2x1x32xf32, #tpu.memory_space<vmem>>, vector<1x1x32xf32>
    %122 = vector.shape_cast %121 : vector<1x1x32xf32> to vector<1x32xf32>
    %c0_63 = arith.constant 0 : index
    %c0_64 = arith.constant 0 : index
    %c0_65 = arith.constant 0 : index
    %123 = vector.load %arg17[%c0_63, %c0_64, %c0_65] : memref<2x1x32xf32, #tpu.memory_space<vmem>>, vector<1x1x32xf32>
    %124 = vector.shape_cast %123 : vector<1x1x32xf32> to vector<1x32xf32>
    %cst_66 = arith.constant dense<0.000000e+00> : vector<16xf32>
    %125 = vector.multi_reduction <add>, %120, %cst_66 [1] : vector<16x32xf32> to vector<16xf32>
    %126 = vector.shape_cast %125 : vector<16xf32> to vector<16x1xf32>
    %cst_67 = arith.constant 3.200000e+01 : f32
    %127 = vector.broadcast %cst_67 : f32 to vector<16x1xf32>
    %128 = arith.divf %126, %127 : vector<16x1xf32>
    %129 = vector.broadcast %128 : vector<16x1xf32> to vector<16x32xf32>
    %130 = arith.subf %120, %129 : vector<16x32xf32>
    %131 = arith.mulf %130, %130 : vector<16x32xf32>
    %cst_68 = arith.constant dense<0.000000e+00> : vector<16xf32>
    %132 = vector.multi_reduction <add>, %131, %cst_68 [1] : vector<16x32xf32> to vector<16xf32>
    %133 = vector.shape_cast %132 : vector<16xf32> to vector<16x1xf32>
    %cst_69 = arith.constant 3.200000e+01 : f32
    %134 = vector.broadcast %cst_69 : f32 to vector<16x1xf32>
    %135 = arith.divf %133, %134 : vector<16x1xf32>
    %cst_70 = arith.constant 9.99999996E-13 : f32
    %136 = vector.broadcast %cst_70 : f32 to vector<16x1xf32>
    %137 = arith.addf %135, %136 : vector<16x1xf32>
    %138 = math.rsqrt %137 : vector<16x1xf32>
    %139 = vector.broadcast %138 : vector<16x1xf32> to vector<16x32xf32>
    %140 = arith.mulf %130, %139 : vector<16x32xf32>
    %141 = vector.broadcast %122 : vector<1x32xf32> to vector<16x32xf32>
    %142 = arith.mulf %140, %141 : vector<16x32xf32>
    %143 = vector.broadcast %124 : vector<1x32xf32> to vector<16x32xf32>
    %144 = arith.addf %142, %143 : vector<16x32xf32>
    %145 = arith.truncf %144 : vector<16x32xf32> to vector<16x32xbf16>
    %c0_71 = arith.constant 0 : index
    %c0_72 = arith.constant 0 : index
    %c0_73 = arith.constant 0 : index
    %146 = vector.load %arg18[%c0_71, %c0_72, %c0_73] : memref<2x32x64xbf16, #tpu.memory_space<vmem>>, vector<1x32x64xbf16>
    %147 = vector.shape_cast %146 : vector<1x32x64xbf16> to vector<32x64xbf16>
    %cst_74 = arith.constant dense<0.000000e+00> : vector<16x64xf32>
    %148 = tpu.matmul %145, %147, %cst_74 {dimension_numbers = #tpu.dot_dimension_numbers<[1], [0], [0], [1], [0, 0, 1, 1], [], []>} : vector<16x32xbf16>, vector<32x64xbf16>, vector<16x64xf32> -> vector<16x64xf32>
    %c0_75 = arith.constant 0 : index
    %c0_76 = arith.constant 0 : index
    %c0_77 = arith.constant 0 : index
    %149 = vector.load %arg19[%c0_75, %c0_76, %c0_77] : memref<2x1x64xf32, #tpu.memory_space<vmem>>, vector<1x1x64xf32>
    %150 = vector.shape_cast %149 : vector<1x1x64xf32> to vector<1x64xf32>
    %151 = vector.broadcast %150 : vector<1x64xf32> to vector<16x64xf32>
    %152 = arith.addf %148, %151 : vector<16x64xf32>
    %cst_78 = arith.constant 5.000000e-01 : f32
    %153 = vector.broadcast %cst_78 : f32 to vector<16x64xf32>
    %154 = arith.mulf %153, %152 : vector<16x64xf32>
    %cst_79 = arith.constant 0.707106769 : f32
    %155 = vector.broadcast %cst_79 : f32 to vector<16x64xf32>
    %156 = arith.mulf %152, %155 : vector<16x64xf32>
    %157 = math.erf %156 : vector<16x64xf32>
    %cst_80 = arith.constant 1.000000e+00 : f32
    %158 = vector.broadcast %cst_80 : f32 to vector<16x64xf32>
    %159 = arith.addf %158, %157 : vector<16x64xf32>
    %160 = arith.mulf %154, %159 : vector<16x64xf32>
    %161 = arith.truncf %160 : vector<16x64xf32> to vector<16x64xbf16>
    %c0_81 = arith.constant 0 : index
    %c0_82 = arith.constant 0 : index
    %c0_83 = arith.constant 0 : index
    %162 = vector.load %arg20[%c0_81, %c0_82, %c0_83] : memref<2x64x32xbf16, #tpu.memory_space<vmem>>, vector<1x64x32xbf16>
    %163 = vector.shape_cast %162 : vector<1x64x32xbf16> to vector<64x32xbf16>
    %cst_84 = arith.constant dense<0.000000e+00> : vector<16x32xf32>
    %164 = tpu.matmul %161, %163, %cst_84 {dimension_numbers = #tpu.dot_dimension_numbers<[1], [0], [0], [1], [0, 0, 1, 1], [], []>} : vector<16x64xbf16>, vector<64x32xbf16>, vector<16x32xf32> -> vector<16x32xf32>
    %c0_85 = arith.constant 0 : index
    %c0_86 = arith.constant 0 : index
    %c0_87 = arith.constant 0 : index
    %165 = vector.load %arg21[%c0_85, %c0_86, %c0_87] : memref<2x1x32xf32, #tpu.memory_space<vmem>>, vector<1x1x32xf32>
    %166 = vector.shape_cast %165 : vector<1x1x32xf32> to vector<1x32xf32>
    %167 = vector.broadcast %166 : vector<1x32xf32> to vector<16x32xf32>
    %168 = arith.addf %164, %167 : vector<16x32xf32>
    %169 = arith.addf %168, %144 : vector<16x32xf32>
    %c0_88 = arith.constant 0 : index
    %c0_89 = arith.constant 0 : index
    %c0_90 = arith.constant 0 : index
    %170 = vector.load %arg22[%c0_88, %c0_89, %c0_90] : memref<2x1x32xf32, #tpu.memory_space<vmem>>, vector<1x1x32xf32>
    %171 = vector.shape_cast %170 : vector<1x1x32xf32> to vector<1x32xf32>
    %c0_91 = arith.constant 0 : index
    %c0_92 = arith.constant 0 : index
    %c0_93 = arith.constant 0 : index
    %172 = vector.load %arg23[%c0_91, %c0_92, %c0_93] : memref<2x1x32xf32, #tpu.memory_space<vmem>>, vector<1x1x32xf32>
    %173 = vector.shape_cast %172 : vector<1x1x32xf32> to vector<1x32xf32>
    %cst_94 = arith.constant dense<0.000000e+00> : vector<16xf32>
    %174 = vector.multi_reduction <add>, %169, %cst_94 [1] : vector<16x32xf32> to vector<16xf32>
    %175 = vector.shape_cast %174 : vector<16xf32> to vector<16x1xf32>
    %cst_95 = arith.constant 3.200000e+01 : f32
    %176 = vector.broadcast %cst_95 : f32 to vector<16x1xf32>
    %177 = arith.divf %175, %176 : vector<16x1xf32>
    %178 = vector.broadcast %177 : vector<16x1xf32> to vector<16x32xf32>
    %179 = arith.subf %169, %178 : vector<16x32xf32>
    %180 = arith.mulf %179, %179 : vector<16x32xf32>
    %cst_96 = arith.constant dense<0.000000e+00> : vector<16xf32>
    %181 = vector.multi_reduction <add>, %180, %cst_96 [1] : vector<16x32xf32> to vector<16xf32>
    %182 = vector.shape_cast %181 : vector<16xf32> to vector<16x1xf32>
    %cst_97 = arith.constant 3.200000e+01 : f32
    %183 = vector.broadcast %cst_97 : f32 to vector<16x1xf32>
    %184 = arith.divf %182, %183 : vector<16x1xf32>
    %cst_98 = arith.constant 9.99999996E-13 : f32
    %185 = vector.broadcast %cst_98 : f32 to vector<16x1xf32>
    %186 = arith.addf %184, %185 : vector<16x1xf32>
    %187 = math.rsqrt %186 : vector<16x1xf32>
    %188 = vector.broadcast %187 : vector<16x1xf32> to vector<16x32xf32>
    %189 = arith.mulf %179, %188 : vector<16x32xf32>
    %190 = vector.broadcast %171 : vector<1x32xf32> to vector<16x32xf32>
    %191 = arith.mulf %189, %190 : vector<16x32xf32>
    %192 = vector.broadcast %173 : vector<1x32xf32> to vector<16x32xf32>
    %193 = arith.addf %191, %192 : vector<16x32xf32>
    %194 = arith.truncf %193 : vector<16x32xf32> to vector<16x32xbf16>
    %c1 = arith.constant 1 : index
    %c0_99 = arith.constant 0 : index
    %c0_100 = arith.constant 0 : index
    %195 = vector.load %arg8[%c1, %c0_99, %c0_100] : memref<2x32x32xbf16, #tpu.memory_space<vmem>>, vector<1x32x32xbf16>
    %196 = vector.shape_cast %195 : vector<1x32x32xbf16> to vector<32x32xbf16>
    %cst_101 = arith.constant dense<0.000000e+00> : vector<16x32xf32>
    %197 = tpu.matmul %194, %196, %cst_101 {dimension_numbers = #tpu.dot_dimension_numbers<[1], [0], [0], [1], [0, 0, 1, 1], [], []>} : vector<16x32xbf16>, vector<32x32xbf16>, vector<16x32xf32> -> vector<16x32xf32>
    %c1_102 = arith.constant 1 : index
    %c0_103 = arith.constant 0 : index
    %c0_104 = arith.constant 0 : index
    %198 = vector.load %arg11[%c1_102, %c0_103, %c0_104] : memref<2x1x32xf32, #tpu.memory_space<vmem>>, vector<1x1x32xf32>
    %199 = vector.shape_cast %198 : vector<1x1x32xf32> to vector<1x32xf32>
    %200 = vector.broadcast %199 : vector<1x32xf32> to vector<16x32xf32>
    %201 = arith.addf %197, %200 : vector<16x32xf32>
    %c1_105 = arith.constant 1 : index
    %c0_106 = arith.constant 0 : index
    %c0_107 = arith.constant 0 : index
    %202 = vector.load %arg9[%c1_105, %c0_106, %c0_107] : memref<2x32x32xbf16, #tpu.memory_space<vmem>>, vector<1x32x32xbf16>
    %203 = vector.shape_cast %202 : vector<1x32x32xbf16> to vector<32x32xbf16>
    %cst_108 = arith.constant dense<0.000000e+00> : vector<16x32xf32>
    %204 = tpu.matmul %194, %203, %cst_108 {dimension_numbers = #tpu.dot_dimension_numbers<[1], [0], [0], [1], [0, 0, 1, 1], [], []>} : vector<16x32xbf16>, vector<32x32xbf16>, vector<16x32xf32> -> vector<16x32xf32>
    %c1_109 = arith.constant 1 : index
    %c0_110 = arith.constant 0 : index
    %c0_111 = arith.constant 0 : index
    %205 = vector.load %arg12[%c1_109, %c0_110, %c0_111] : memref<2x1x32xf32, #tpu.memory_space<vmem>>, vector<1x1x32xf32>
    %206 = vector.shape_cast %205 : vector<1x1x32xf32> to vector<1x32xf32>
    %207 = vector.broadcast %206 : vector<1x32xf32> to vector<16x32xf32>
    %208 = arith.addf %204, %207 : vector<16x32xf32>
    %c1_112 = arith.constant 1 : index
    %c0_113 = arith.constant 0 : index
    %c0_114 = arith.constant 0 : index
    %209 = vector.load %arg10[%c1_112, %c0_113, %c0_114] : memref<2x32x32xbf16, #tpu.memory_space<vmem>>, vector<1x32x32xbf16>
    %210 = vector.shape_cast %209 : vector<1x32x32xbf16> to vector<32x32xbf16>
    %cst_115 = arith.constant dense<0.000000e+00> : vector<16x32xf32>
    %211 = tpu.matmul %194, %210, %cst_115 {dimension_numbers = #tpu.dot_dimension_numbers<[1], [0], [0], [1], [0, 0, 1, 1], [], []>} : vector<16x32xbf16>, vector<32x32xbf16>, vector<16x32xf32> -> vector<16x32xf32>
    %c1_116 = arith.constant 1 : index
    %c0_117 = arith.constant 0 : index
    %c0_118 = arith.constant 0 : index
    %212 = vector.load %arg13[%c1_116, %c0_117, %c0_118] : memref<2x1x32xf32, #tpu.memory_space<vmem>>, vector<1x1x32xf32>
    %213 = vector.shape_cast %212 : vector<1x1x32xf32> to vector<1x32xf32>
    %214 = vector.broadcast %213 : vector<1x32xf32> to vector<16x32xf32>
    %215 = arith.addf %211, %214 : vector<16x32xf32>
    %216 = vector.extract_strided_slice %201 {offsets = [0, 0], sizes = [8, 32], strides = [1, 1]} : vector<16x32xf32> to vector<8x32xf32>
    %217 = vector.extract_strided_slice %208 {offsets = [0, 0], sizes = [8, 32], strides = [1, 1]} : vector<16x32xf32> to vector<8x32xf32>
    %218 = vector.extract_strided_slice %215 {offsets = [0, 0], sizes = [8, 32], strides = [1, 1]} : vector<16x32xf32> to vector<8x32xf32>
    %219 = tpu.concatenate %217, %217, %217, %217 in 0 : vector<8x32xf32>, vector<8x32xf32>, vector<8x32xf32>, vector<8x32xf32> -> vector<32x32xf32>
    %220 = arith.mulf %219, %34 : vector<32x32xf32>
    %221 = arith.truncf %216 : vector<8x32xf32> to vector<8x32xbf16>
    %222 = arith.truncf %220 : vector<32x32xf32> to vector<32x32xbf16>
    %cst_119 = arith.constant dense<0.000000e+00> : vector<8x32xf32>
    %223 = tpu.matmul %221, %222, %cst_119 {dimension_numbers = #tpu.dot_dimension_numbers<[1], [1], [0], [0], [0, 0, 1, 0], [], []>} : vector<8x32xbf16>, vector<32x32xbf16>, vector<8x32xf32> -> vector<8x32xf32>
    %cst_120 = arith.constant 0.353553385 : f32
    %224 = vector.broadcast %cst_120 : f32 to vector<8x32xf32>
    %225 = arith.mulf %223, %224 : vector<8x32xf32>
    %226 = arith.addf %225, %39 : vector<8x32xf32>
    %cst_121 = arith.constant dense<0xFF800000> : vector<8xf32>
    %227 = vector.multi_reduction <maximumf>, %226, %cst_121 [1] : vector<8x32xf32> to vector<8xf32>
    %228 = vector.shape_cast %227 : vector<8xf32> to vector<8x1xf32>
    %229 = vector.broadcast %228 : vector<8x1xf32> to vector<8x32xf32>
    %230 = arith.subf %226, %229 : vector<8x32xf32>
    %231 = math.exp %230 : vector<8x32xf32>
    %cst_122 = arith.constant dense<0.000000e+00> : vector<8x32xf32>
    %232 = tpu.matmul %231, %35, %cst_122 {dimension_numbers = #tpu.dot_dimension_numbers<[1], [0], [0], [1], [0, 0, 1, 1], [], []>} : vector<8x32xf32>, vector<32x32xf32>, vector<8x32xf32> -> vector<8x32xf32>
    %233 = arith.divf %231, %232 : vector<8x32xf32>
    %234 = tpu.concatenate %218, %218, %218, %218 in 0 : vector<8x32xf32>, vector<8x32xf32>, vector<8x32xf32>, vector<8x32xf32> -> vector<32x32xf32>
    %235 = arith.mulf %234, %34 : vector<32x32xf32>
    %236 = arith.truncf %233 : vector<8x32xf32> to vector<8x32xbf16>
    %237 = arith.truncf %235 : vector<32x32xf32> to vector<32x32xbf16>
    %cst_123 = arith.constant dense<0.000000e+00> : vector<8x32xf32>
    %238 = tpu.matmul %236, %237, %cst_123 {dimension_numbers = #tpu.dot_dimension_numbers<[1], [0], [0], [1], [0, 0, 1, 1], [], []>} : vector<8x32xbf16>, vector<32x32xbf16>, vector<8x32xf32> -> vector<8x32xf32>
    %239 = vector.extract_strided_slice %201 {offsets = [8, 0], sizes = [8, 32], strides = [1, 1]} : vector<16x32xf32> to vector<8x32xf32>
    %240 = vector.extract_strided_slice %208 {offsets = [8, 0], sizes = [8, 32], strides = [1, 1]} : vector<16x32xf32> to vector<8x32xf32>
    %241 = vector.extract_strided_slice %215 {offsets = [8, 0], sizes = [8, 32], strides = [1, 1]} : vector<16x32xf32> to vector<8x32xf32>
    %242 = tpu.concatenate %240, %240, %240, %240 in 0 : vector<8x32xf32>, vector<8x32xf32>, vector<8x32xf32>, vector<8x32xf32> -> vector<32x32xf32>
    %243 = arith.mulf %242, %34 : vector<32x32xf32>
    %244 = arith.truncf %239 : vector<8x32xf32> to vector<8x32xbf16>
    %245 = arith.truncf %243 : vector<32x32xf32> to vector<32x32xbf16>
    %cst_124 = arith.constant dense<0.000000e+00> : vector<8x32xf32>
    %246 = tpu.matmul %244, %245, %cst_124 {dimension_numbers = #tpu.dot_dimension_numbers<[1], [1], [0], [0], [0, 0, 1, 0], [], []>} : vector<8x32xbf16>, vector<32x32xbf16>, vector<8x32xf32> -> vector<8x32xf32>
    %cst_125 = arith.constant 0.353553385 : f32
    %247 = vector.broadcast %cst_125 : f32 to vector<8x32xf32>
    %248 = arith.mulf %246, %247 : vector<8x32xf32>
    %249 = arith.addf %248, %42 : vector<8x32xf32>
    %cst_126 = arith.constant dense<0xFF800000> : vector<8xf32>
    %250 = vector.multi_reduction <maximumf>, %249, %cst_126 [1] : vector<8x32xf32> to vector<8xf32>
    %251 = vector.shape_cast %250 : vector<8xf32> to vector<8x1xf32>
    %252 = vector.broadcast %251 : vector<8x1xf32> to vector<8x32xf32>
    %253 = arith.subf %249, %252 : vector<8x32xf32>
    %254 = math.exp %253 : vector<8x32xf32>
    %cst_127 = arith.constant dense<0.000000e+00> : vector<8x32xf32>
    %255 = tpu.matmul %254, %35, %cst_127 {dimension_numbers = #tpu.dot_dimension_numbers<[1], [0], [0], [1], [0, 0, 1, 1], [], []>} : vector<8x32xf32>, vector<32x32xf32>, vector<8x32xf32> -> vector<8x32xf32>
    %256 = arith.divf %254, %255 : vector<8x32xf32>
    %257 = tpu.concatenate %241, %241, %241, %241 in 0 : vector<8x32xf32>, vector<8x32xf32>, vector<8x32xf32>, vector<8x32xf32> -> vector<32x32xf32>
    %258 = arith.mulf %257, %34 : vector<32x32xf32>
    %259 = arith.truncf %256 : vector<8x32xf32> to vector<8x32xbf16>
    %260 = arith.truncf %258 : vector<32x32xf32> to vector<32x32xbf16>
    %cst_128 = arith.constant dense<0.000000e+00> : vector<8x32xf32>
    %261 = tpu.matmul %259, %260, %cst_128 {dimension_numbers = #tpu.dot_dimension_numbers<[1], [0], [0], [1], [0, 0, 1, 1], [], []>} : vector<8x32xbf16>, vector<32x32xbf16>, vector<8x32xf32> -> vector<8x32xf32>
    %262 = tpu.concatenate %238, %261 in 0 : vector<8x32xf32>, vector<8x32xf32> -> vector<16x32xf32>
    %263 = arith.truncf %262 : vector<16x32xf32> to vector<16x32xbf16>
    %c1_129 = arith.constant 1 : index
    %c0_130 = arith.constant 0 : index
    %c0_131 = arith.constant 0 : index
    %264 = vector.load %arg14[%c1_129, %c0_130, %c0_131] : memref<2x32x32xbf16, #tpu.memory_space<vmem>>, vector<1x32x32xbf16>
    %265 = vector.shape_cast %264 : vector<1x32x32xbf16> to vector<32x32xbf16>
    %cst_132 = arith.constant dense<0.000000e+00> : vector<16x32xf32>
    %266 = tpu.matmul %263, %265, %cst_132 {dimension_numbers = #tpu.dot_dimension_numbers<[1], [0], [0], [1], [0, 0, 1, 1], [], []>} : vector<16x32xbf16>, vector<32x32xbf16>, vector<16x32xf32> -> vector<16x32xf32>
    %c1_133 = arith.constant 1 : index
    %c0_134 = arith.constant 0 : index
    %c0_135 = arith.constant 0 : index
    %267 = vector.load %arg15[%c1_133, %c0_134, %c0_135] : memref<2x1x32xf32, #tpu.memory_space<vmem>>, vector<1x1x32xf32>
    %268 = vector.shape_cast %267 : vector<1x1x32xf32> to vector<1x32xf32>
    %269 = vector.broadcast %268 : vector<1x32xf32> to vector<16x32xf32>
    %270 = arith.addf %266, %269 : vector<16x32xf32>
    %271 = arith.addf %270, %193 : vector<16x32xf32>
    %c1_136 = arith.constant 1 : index
    %c0_137 = arith.constant 0 : index
    %c0_138 = arith.constant 0 : index
    %272 = vector.load %arg16[%c1_136, %c0_137, %c0_138] : memref<2x1x32xf32, #tpu.memory_space<vmem>>, vector<1x1x32xf32>
    %273 = vector.shape_cast %272 : vector<1x1x32xf32> to vector<1x32xf32>
    %c1_139 = arith.constant 1 : index
    %c0_140 = arith.constant 0 : index
    %c0_141 = arith.constant 0 : index
    %274 = vector.load %arg17[%c1_139, %c0_140, %c0_141] : memref<2x1x32xf32, #tpu.memory_space<vmem>>, vector<1x1x32xf32>
    %275 = vector.shape_cast %274 : vector<1x1x32xf32> to vector<1x32xf32>
    %cst_142 = arith.constant dense<0.000000e+00> : vector<16xf32>
    %276 = vector.multi_reduction <add>, %271, %cst_142 [1] : vector<16x32xf32> to vector<16xf32>
    %277 = vector.shape_cast %276 : vector<16xf32> to vector<16x1xf32>
    %cst_143 = arith.constant 3.200000e+01 : f32
    %278 = vector.broadcast %cst_143 : f32 to vector<16x1xf32>
    %279 = arith.divf %277, %278 : vector<16x1xf32>
    %280 = vector.broadcast %279 : vector<16x1xf32> to vector<16x32xf32>
    %281 = arith.subf %271, %280 : vector<16x32xf32>
    %282 = arith.mulf %281, %281 : vector<16x32xf32>
    %cst_144 = arith.constant dense<0.000000e+00> : vector<16xf32>
    %283 = vector.multi_reduction <add>, %282, %cst_144 [1] : vector<16x32xf32> to vector<16xf32>
    %284 = vector.shape_cast %283 : vector<16xf32> to vector<16x1xf32>
    %cst_145 = arith.constant 3.200000e+01 : f32
    %285 = vector.broadcast %cst_145 : f32 to vector<16x1xf32>
    %286 = arith.divf %284, %285 : vector<16x1xf32>
    %cst_146 = arith.constant 9.99999996E-13 : f32
    %287 = vector.broadcast %cst_146 : f32 to vector<16x1xf32>
    %288 = arith.addf %286, %287 : vector<16x1xf32>
    %289 = math.rsqrt %288 : vector<16x1xf32>
    %290 = vector.broadcast %289 : vector<16x1xf32> to vector<16x32xf32>
    %291 = arith.mulf %281, %290 : vector<16x32xf32>
    %292 = vector.broadcast %273 : vector<1x32xf32> to vector<16x32xf32>
    %293 = arith.mulf %291, %292 : vector<16x32xf32>
    %294 = vector.broadcast %275 : vector<1x32xf32> to vector<16x32xf32>
    %295 = arith.addf %293, %294 : vector<16x32xf32>
    %296 = arith.truncf %295 : vector<16x32xf32> to vector<16x32xbf16>
    %c1_147 = arith.constant 1 : index
    %c0_148 = arith.constant 0 : index
    %c0_149 = arith.constant 0 : index
    %297 = vector.load %arg18[%c1_147, %c0_148, %c0_149] : memref<2x32x64xbf16, #tpu.memory_space<vmem>>, vector<1x32x64xbf16>
    %298 = vector.shape_cast %297 : vector<1x32x64xbf16> to vector<32x64xbf16>
    %cst_150 = arith.constant dense<0.000000e+00> : vector<16x64xf32>
    %299 = tpu.matmul %296, %298, %cst_150 {dimension_numbers = #tpu.dot_dimension_numbers<[1], [0], [0], [1], [0, 0, 1, 1], [], []>} : vector<16x32xbf16>, vector<32x64xbf16>, vector<16x64xf32> -> vector<16x64xf32>
    %c1_151 = arith.constant 1 : index
    %c0_152 = arith.constant 0 : index
    %c0_153 = arith.constant 0 : index
    %300 = vector.load %arg19[%c1_151, %c0_152, %c0_153] : memref<2x1x64xf32, #tpu.memory_space<vmem>>, vector<1x1x64xf32>
    %301 = vector.shape_cast %300 : vector<1x1x64xf32> to vector<1x64xf32>
    %302 = vector.broadcast %301 : vector<1x64xf32> to vector<16x64xf32>
    %303 = arith.addf %299, %302 : vector<16x64xf32>
    %cst_154 = arith.constant 5.000000e-01 : f32
    %304 = vector.broadcast %cst_154 : f32 to vector<16x64xf32>
    %305 = arith.mulf %304, %303 : vector<16x64xf32>
    %cst_155 = arith.constant 0.707106769 : f32
    %306 = vector.broadcast %cst_155 : f32 to vector<16x64xf32>
    %307 = arith.mulf %303, %306 : vector<16x64xf32>
    %308 = math.erf %307 : vector<16x64xf32>
    %cst_156 = arith.constant 1.000000e+00 : f32
    %309 = vector.broadcast %cst_156 : f32 to vector<16x64xf32>
    %310 = arith.addf %309, %308 : vector<16x64xf32>
    %311 = arith.mulf %305, %310 : vector<16x64xf32>
    %312 = arith.truncf %311 : vector<16x64xf32> to vector<16x64xbf16>
    %c1_157 = arith.constant 1 : index
    %c0_158 = arith.constant 0 : index
    %c0_159 = arith.constant 0 : index
    %313 = vector.load %arg20[%c1_157, %c0_158, %c0_159] : memref<2x64x32xbf16, #tpu.memory_space<vmem>>, vector<1x64x32xbf16>
    %314 = vector.shape_cast %313 : vector<1x64x32xbf16> to vector<64x32xbf16>
    %cst_160 = arith.constant dense<0.000000e+00> : vector<16x32xf32>
    %315 = tpu.matmul %312, %314, %cst_160 {dimension_numbers = #tpu.dot_dimension_numbers<[1], [0], [0], [1], [0, 0, 1, 1], [], []>} : vector<16x64xbf16>, vector<64x32xbf16>, vector<16x32xf32> -> vector<16x32xf32>
    %c1_161 = arith.constant 1 : index
    %c0_162 = arith.constant 0 : index
    %c0_163 = arith.constant 0 : index
    %316 = vector.load %arg21[%c1_161, %c0_162, %c0_163] : memref<2x1x32xf32, #tpu.memory_space<vmem>>, vector<1x1x32xf32>
    %317 = vector.shape_cast %316 : vector<1x1x32xf32> to vector<1x32xf32>
    %318 = vector.broadcast %317 : vector<1x32xf32> to vector<16x32xf32>
    %319 = arith.addf %315, %318 : vector<16x32xf32>
    %320 = arith.addf %319, %295 : vector<16x32xf32>
    %c1_164 = arith.constant 1 : index
    %c0_165 = arith.constant 0 : index
    %c0_166 = arith.constant 0 : index
    %321 = vector.load %arg22[%c1_164, %c0_165, %c0_166] : memref<2x1x32xf32, #tpu.memory_space<vmem>>, vector<1x1x32xf32>
    %322 = vector.shape_cast %321 : vector<1x1x32xf32> to vector<1x32xf32>
    %c1_167 = arith.constant 1 : index
    %c0_168 = arith.constant 0 : index
    %c0_169 = arith.constant 0 : index
    %323 = vector.load %arg23[%c1_167, %c0_168, %c0_169] : memref<2x1x32xf32, #tpu.memory_space<vmem>>, vector<1x1x32xf32>
    %324 = vector.shape_cast %323 : vector<1x1x32xf32> to vector<1x32xf32>
    %cst_170 = arith.constant dense<0.000000e+00> : vector<16xf32>
    %325 = vector.multi_reduction <add>, %320, %cst_170 [1] : vector<16x32xf32> to vector<16xf32>
    %326 = vector.shape_cast %325 : vector<16xf32> to vector<16x1xf32>
    %cst_171 = arith.constant 3.200000e+01 : f32
    %327 = vector.broadcast %cst_171 : f32 to vector<16x1xf32>
    %328 = arith.divf %326, %327 : vector<16x1xf32>
    %329 = vector.broadcast %328 : vector<16x1xf32> to vector<16x32xf32>
    %330 = arith.subf %320, %329 : vector<16x32xf32>
    %331 = arith.mulf %330, %330 : vector<16x32xf32>
    %cst_172 = arith.constant dense<0.000000e+00> : vector<16xf32>
    %332 = vector.multi_reduction <add>, %331, %cst_172 [1] : vector<16x32xf32> to vector<16xf32>
    %333 = vector.shape_cast %332 : vector<16xf32> to vector<16x1xf32>
    %cst_173 = arith.constant 3.200000e+01 : f32
    %334 = vector.broadcast %cst_173 : f32 to vector<16x1xf32>
    %335 = arith.divf %333, %334 : vector<16x1xf32>
    %cst_174 = arith.constant 9.99999996E-13 : f32
    %336 = vector.broadcast %cst_174 : f32 to vector<16x1xf32>
    %337 = arith.addf %335, %336 : vector<16x1xf32>
    %338 = math.rsqrt %337 : vector<16x1xf32>
    %339 = vector.broadcast %338 : vector<16x1xf32> to vector<16x32xf32>
    %340 = arith.mulf %330, %339 : vector<16x32xf32>
    %341 = vector.broadcast %322 : vector<1x32xf32> to vector<16x32xf32>
    %342 = arith.mulf %340, %341 : vector<16x32xf32>
    %343 = vector.broadcast %324 : vector<1x32xf32> to vector<16x32xf32>
    %344 = arith.addf %342, %343 : vector<16x32xf32>
    %345 = vector.extract_strided_slice %344 {offsets = [0, 0], sizes = [1, 32], strides = [1, 1]} : vector<16x32xf32> to vector<1x32xf32>
    %346 = vector.extract_strided_slice %344 {offsets = [8, 0], sizes = [1, 32], strides = [1, 1]} : vector<16x32xf32> to vector<1x32xf32>
    %347 = tpu.concatenate %345, %346 in 0 : vector<1x32xf32>, vector<1x32xf32> -> vector<2x32xf32>
    %348 = arith.truncf %347 : vector<2x32xf32> to vector<2x32xbf16>
    %c0_175 = arith.constant 0 : index
    %c0_176 = arith.constant 0 : index
    %349 = vector.load %arg24[%c0_175, %c0_176] : memref<32x32xbf16, #tpu.memory_space<vmem>>, vector<32x32xbf16>
    %cst_177 = arith.constant dense<0.000000e+00> : vector<2x32xf32>
    %350 = tpu.matmul %348, %349, %cst_177 {dimension_numbers = #tpu.dot_dimension_numbers<[1], [0], [0], [1], [0, 0, 1, 1], [], []>} : vector<2x32xbf16>, vector<32x32xbf16>, vector<2x32xf32> -> vector<2x32xf32>
    %c0_178 = arith.constant 0 : index
    %c0_179 = arith.constant 0 : index
    %351 = vector.load %arg25[%c0_178, %c0_179] : memref<1x32xf32, #tpu.memory_space<vmem>>, vector<1x32xf32>
    %352 = vector.broadcast %351 : vector<1x32xf32> to vector<2x32xf32>
    %353 = arith.addf %350, %352 : vector<2x32xf32>
    %354 = math.tanh %353 : vector<2x32xf32>
    %355 = arith.truncf %354 : vector<2x32xf32> to vector<2x32xbf16>
    %c0_180 = arith.constant 0 : index
    %c0_181 = arith.constant 0 : index
    %356 = vector.load %arg26[%c0_180, %c0_181] : memref<32x128xbf16, #tpu.memory_space<vmem>>, vector<32x128xbf16>
    %cst_182 = arith.constant dense<0.000000e+00> : vector<2x128xf32>
    %357 = tpu.matmul %355, %356, %cst_182 {dimension_numbers = #tpu.dot_dimension_numbers<[1], [0], [0], [1], [0, 0, 1, 1], [], []>} : vector<2x32xbf16>, vector<32x128xbf16>, vector<2x128xf32> -> vector<2x128xf32>
    %c0_183 = arith.constant 0 : index
    %c0_184 = arith.constant 0 : index
    %358 = vector.load %arg27[%c0_183, %c0_184] : memref<1x128xf32, #tpu.memory_space<vmem>>, vector<1x128xf32>
    %359 = vector.broadcast %358 : vector<1x128xf32> to vector<2x128xf32>
    %360 = arith.addf %357, %359 : vector<2x128xf32>
    %c0_185 = arith.constant 0 : index
    %c0_186 = arith.constant 0 : index
    %361 = vector.load %arg28[%c0_185, %c0_186] : memref<2x128xf32, #tpu.memory_space<vmem>>, vector<2x128xf32>
    tpu.vector_store %arg28[%c0_185, %c0_186], %360 {strides = array<i32>} : memref<2x128xf32, #tpu.memory_space<vmem>>, vector<2x128xf32>,
    return
  }
}

</mosaic_0001>

<llo_original>
// kernel: tile.19
$region0: #{tile.19}
  %s0 = inlined_call_operand.vmem [shape: f32[2,4,8], index: 0, kind: input, shape index: {}]
  %s1 = inlined_call_operand.vmem [shape: f32[2,32], index: 1, kind: output, shape index: {}]
  $region1: #{tile.19} parent=0
    #allocation0 [shape = 'u8[4096]{0}', space=vmem, size = 0x1000, scoped, tag = 'scoped mem for output reshape']
    #allocation1 [shape = 'u8[8192]{0}', space=vmem, size = 0x2000, scoped, tag = 'scoped mem for input reshape']
    %s3 = ssub.s32 16, 1
    %s4 = scalar_lea.vmem %s0, 4
    %v5 = vld [vmem:[%s4] sm:%s3]
    %s6 = scalar_lea.vmem [#allocation1], 8
    %7 = vst [vmem:[%s6] sm:%s3] %v5
    %v8 = vld [vmem:[%s0] sm:%s3]
    %9 = vst [vmem:[#allocation1] sm:%s3] %v8
    %s10 = smov 3
    %v11 = vld [vmem:[#allocation1] ss:$8 sm:%s10]
    %vm12 = vcmask 64512
    %13 = vst.msk [vmem:[#allocation0] sm:$0x3] %vm12, %v11
    %s14 = scalar_lea.vmem [#allocation1], 3
    %s15 = smov 3
    %v16 = vld [vmem:[%s14] ss:$8 sm:%s15]
    %17 = vrot.lane.b32.xlu0 %v16, 24
    %v18 = vpop.permute.xlu0 %17
    %vm19 = vcmask 261312
    %20 = vst.msk [vmem:[#allocation0] sm:$0x3] %vm19, %v18
    %s21 = scalar_lea.vmem [#allocation1], 2
    %s22 = smov 3
    %v23 = vld [vmem:[%s21] ss:$8 sm:%s22]
    %24 = vrot.lane.b32.xlu0 %v23, 16
    %v25 = vpop.permute.xlu0 %24
    %vm26 = vcmask 195712
    %27 = vst.msk [vmem:[#allocation0] sm:$0x3] %vm26, %v25
    %s28 = scalar_lea.vmem [#allocation1], 1
    %s29 = smov 3
    %v30 = vld [vmem:[%s28] ss:$8 sm:%s29]
    %31 = vrot.lane.b32.xlu0 %v30, 8
    %v32 = vpop.permute.xlu0 %31
    %vm33 = vcmask 130112
    %34 = vst.msk [vmem:[#allocation0] sm:$0x3] %vm33, %v32
    %s36 = ssub.s32 4, 1
    %v37 = vld [vmem:[#allocation0] sm:%s36]
    %s39 = ssub.s32 4, 1
    %40 = vst [vmem:[%s1] sm:%s39] %v37

// kernel: custom_bert_forward.1
$region0: #{custom_bert_forward.1}
  #allocation0 [shape = 'u32[]', space=smem, size = 0x4, offset = 0x4, fixed_abs, tag = 'smem constant byte address 0x4 - core index']
  #allocation1 [shape = 'u32[72,128]{1,0:T(1,128)}', space=vmem, size = 0x9000, scoped, tag = 'internal scratch']
  %s0 = inlined_call_operand.vmem [shape: s32[16,1], index: 0, kind: input, shape index: {}]
  %s1 = inlined_call_operand.vmem [shape: bf16[50,32], index: 1, kind: input, shape index: {}]
  %s2 = inlined_call_operand.vmem [shape: f32[16,32], index: 2, kind: input, shape index: {}]
  %s3 = inlined_call_operand.vmem [shape: f32[2,32], index: 3, kind: input, shape index: {}]
  %s4 = inlined_call_operand.vmem [shape: f32[32,32], index: 4, kind: input, shape index: {}]
  %s5 = inlined_call_operand.vmem [shape: f32[32,32], index: 5, kind: input, shape index: {}]
  %s6 = inlined_call_operand.vmem [shape: f32[1,32], index: 6, kind: input, shape index: {}]
  %s7 = inlined_call_operand.vmem [shape: f32[1,32], index: 7, kind: input, shape index: {}]
  %s8 = inlined_call_operand.vmem [shape: bf16[2,32,32], index: 8, kind: input, shape index: {}]
  %s9 = inlined_call_operand.vmem [shape: bf16[2,32,32], index: 9, kind: input, shape index: {}]
  %s10 = inlined_call_operand.vmem [shape: bf16[2,32,32], index: 10, kind: input, shape index: {}]
  %s11 = inlined_call_operand.vmem [shape: f32[2,1,32], index: 11, kind: input, shape index: {}]
  %s12 = inlined_call_operand.vmem [shape: f32[2,1,32], index: 12, kind: input, shape index: {}]
  %s13 = inlined_call_operand.vmem [shape: f32[2,1,32], index: 13, kind: input, shape index: {}]
  %s14 = inlined_call_operand.vmem [shape: bf16[2,32,32], index: 14, kind: input, shape index: {}]
  %s15 = inlined_call_operand.vmem [shape: f32[2,1,32], index: 15, kind: input, shape index: {}]
  %s16 = inlined_call_operand.vmem [shape: f32[2,1,32], index: 16, kind: input, shape index: {}]
  %s17 = inlined_call_operand.vmem [shape: f32[2,1,32], index: 17, kind: input, shape index: {}]
  %s18 = inlined_call_operand.vmem [shape: bf16[2,32,64], index: 18, kind: input, shape index: {}]
  %s19 = inlined_call_operand.vmem [shape: f32[2,1,64], index: 19, kind: input, shape index: {}]
  %s20 = inlined_call_operand.vmem [shape: bf16[2,64,32], index: 20, kind: input, shape index: {}]
  %s21 = inlined_call_operand.vmem [shape: f32[2,1,32], index: 21, kind: input, shape index: {}]
  %s22 = inlined_call_operand.vmem [shape: f32[2,1,32], index: 22, kind: input, shape index: {}]
  %s23 = inlined_call_operand.vmem [shape: f32[2,1,32], index: 23, kind: input, shape index: {}]
  %s24 = inlined_call_operand.vmem [shape: bf16[32,32], index: 24, kind: input, shape index: {}]
  %s25 = inlined_call_operand.vmem [shape: f32[1,32], index: 25, kind: input, shape index: {}]
  %s26 = inlined_call_operand.vmem [shape: bf16[32,128], index: 26, kind: input, shape index: {}]
  %s27 = inlined_call_operand.vmem [shape: f32[1,128], index: 27, kind: input, shape index: {}]
  %s28 = inlined_call_operand.hbm [shape: f32[2,128], index: 28, kind: output, shape index: {}]
  %s29 = sld [smem:[#allocation0]]
  $region122: #{custom_bert_forward.1} parent=0
    _
  %s31 = ssub.s32 1, %s29
  %s32 = scalar_select 0, %s31, %s29
  $region1: #{custom_bert_forward.1} parent=0
    #allocation2 [shape = 'u8[1024]{0}', space=vmem, size = 0x400, scoped, tag = 'output window, operand 0, single buffered']
    #allocation3 [shape = 's32[1]{0}', space=sflag, size = 0x4, scoped, tag = 'scoped memory for custom_bert_forward.1']
    %33 = vsyncpa [#allocation3], 0
    // Predicated region
    $region2: #{custom_bert_forward.1} parent=1 // pred_check
      _
    $region3: #{custom_bert_forward.1} parent=1 // pred_check_branch
      %35 = sbr.rel (0) target = $region5
    $region4: #{custom_bert_forward.1} parent=1 // pred_region
      _
    $region5: #{custom_bert_forward.1} parent=1 // pred_fallthru
      _
    // Predicated region
    $region6: #{custom_bert_forward.1} parent=1 // pred_check
      _
    $region7: #{custom_bert_forward.1} parent=1 // pred_check_branch
      %37 = sbr.rel (0) target = $region9
    $region8: #{custom_bert_forward.1} parent=1 // pred_region
      _
    $region9: #{custom_bert_forward.1} parent=1 // pred_fallthru
      _
    // Predicated region
    $region10: #{custom_bert_forward.1} parent=1 // pred_check
      _
    $region11: #{custom_bert_forward.1} parent=1 // pred_check_branch
      %39 = sbr.rel (0) target = $region13
    $region12: #{custom_bert_forward.1} parent=1 // pred_region
      _
    $region13: #{custom_bert_forward.1} parent=1 // pred_fallthru
      _
    // Predicated region
    $region14: #{custom_bert_forward.1} parent=1 // pred_check
      _
    $region15: #{custom_bert_forward.1} parent=1 // pred_check_branch
      %41 = sbr.rel (0) target = $region17
    $region16: #{custom_bert_forward.1} parent=1 // pred_region
      _
    $region17: #{custom_bert_forward.1} parent=1 // pred_fallthru
      _
    // Predicated region
    $region18: #{custom_bert_forward.1} parent=1 // pred_check
      _
    $region19: #{custom_bert_forward.1} parent=1 // pred_check_branch
      %43 = sbr.rel (0) target = $region21
    $region20: #{custom_bert_forward.1} parent=1 // pred_region
      _
    $region21: #{custom_bert_forward.1} parent=1 // pred_fallthru
      _
    // Predicated region
    $region22: #{custom_bert_forward.1} parent=1 // pred_check
      _
    $region23: #{custom_bert_forward.1} parent=1 // pred_check_branch
      %45 = sbr.rel (0) target = $region25
    $region24: #{custom_bert_forward.1} parent=1 // pred_region
      _
    $region25: #{custom_bert_forward.1} parent=1 // pred_fallthru
      _
    // Predicated region
    $region26: #{custom_bert_forward.1} parent=1 // pred_check
      _
    $region27: #{custom_bert_forward.1} parent=1 // pred_check_branch
      %47 = sbr.rel (0) target = $region29
    $region28: #{custom_bert_forward.1} parent=1 // pred_region
      _
    $region29: #{custom_bert_forward.1} parent=1 // pred_fallthru
      _
    // Predicated region
    $region30: #{custom_bert_forward.1} parent=1 // pred_check
      _
    $region31: #{custom_bert_forward.1} parent=1 // pred_check_branch
      %49 = sbr.rel (0) target = $region33
    $region32: #{custom_bert_forward.1} parent=1 // pred_region
      _
    $region33: #{custom_bert_forward.1} parent=1 // pred_fallthru
      _
    // Predicated region
    $region34: #{custom_bert_forward.1} parent=1 // pred_check
      _
    $region35: #{custom_bert_forward.1} parent=1 // pred_check_branch
      %51 = sbr.rel (0) target = $region37
    $region36: #{custom_bert_forward.1} parent=1 // pred_region
      _
    $region37: #{custom_bert_forward.1} parent=1 // pred_fallthru
      _
    // Predicated region
    $region38: #{custom_bert_forward.1} parent=1 // pred_check
      _
    $region39: #{custom_bert_forward.1} parent=1 // pred_check_branch
      %53 = sbr.rel (0) target = $region41
    $region40: #{custom_bert_forward.1} parent=1 // pred_region
      _
    $region41: #{custom_bert_forward.1} parent=1 // pred_fallthru
      _
    // Predicated region
    $region42: #{custom_bert_forward.1} parent=1 // pred_check
      _
    $region43: #{custom_bert_forward.1} parent=1 // pred_check_branch
      %55 = sbr.rel (0) target = $region45
    $region44: #{custom_bert_forward.1} parent=1 // pred_region
      _
    $region45: #{custom_bert_forward.1} parent=1 // pred_fallthru
      _
    // Predicated region
    $region46: #{custom_bert_forward.1} parent=1 // pred_check
      _
    $region47: #{custom_bert_forward.1} parent=1 // pred_check_branch
      %57 = sbr.rel (0) target = $region49
    $region48: #{custom_bert_forward.1} parent=1 // pred_region
      _
    $region49: #{custom_bert_forward.1} parent=1 // pred_fallthru
      _
    // Predicated region
    $region50: #{custom_bert_forward.1} parent=1 // pred_check
      _
    $region51: #{custom_bert_forward.1} parent=1 // pred_check_branch
      %59 = sbr.rel (0) target = $region53
    $region52: #{custom_bert_forward.1} parent=1 // pred_region
      _
    $region53: #{custom_bert_forward.1} parent=1 // pred_fallthru
      _
    // Predicated region
    $region54: #{custom_bert_forward.1} parent=1 // pred_check
      _
    $region55: #{custom_bert_forward.1} parent=1 // pred_check_branch
      %61 = sbr.rel (0) target = $region57
    $region56: #{custom_bert_forward.1} parent=1 // pred_region
      _
    $region57: #{custom_bert_forward.1} parent=1 // pred_fallthru
      _
    // Predicated region
    $region58: #{custom_bert_forward.1} parent=1 // pred_check
      _
    $region59: #{custom_bert_forward.1} parent=1 // pred_check_branch
      %63 = sbr.rel (0) target = $region61
    $region60: #{custom_bert_forward.1} parent=1 // pred_region
      _
    $region61: #{custom_bert_forward.1} parent=1 // pred_fallthru
      _
    // Predicated region
    $region62: #{custom_bert_forward.1} parent=1 // pred_check
      _
    $region63: #{custom_bert_forward.1} parent=1 // pred_check_branch
      %65 = sbr.rel (0) target = $region65
    $region64: #{custom_bert_forward.1} parent=1 // pred_region
      _
    $region65: #{custom_bert_forward.1} parent=1 // pred_fallthru
      _
    // Predicated region
    $region66: #{custom_bert_forward.1} parent=1 // pred_check
      _
    $region67: #{custom_bert_forward.1} parent=1 // pred_check_branch
      %67 = sbr.rel (0) target = $region69
    $region68: #{custom_bert_forward.1} parent=1 // pred_region
      _
    $region69: #{custom_bert_forward.1} parent=1 // pred_fallthru
      _
    // Predicated region
    $region70: #{custom_bert_forward.1} parent=1 // pred_check
      _
    $region71: #{custom_bert_forward.1} parent=1 // pred_check_branch
      %69 = sbr.rel (0) target = $region73
    $region72: #{custom_bert_forward.1} parent=1 // pred_region
      _
    $region73: #{custom_bert_forward.1} parent=1 // pred_fallthru
      _
    // Predicated region
    $region74: #{custom_bert_forward.1} parent=1 // pred_check
      _
    $region75: #{custom_bert_forward.1} parent=1 // pred_check_branch
      %71 = sbr.rel (0) target = $region77
    $region76: #{custom_bert_forward.1} parent=1 // pred_region
      _
    $region77: #{custom_bert_forward.1} parent=1 // pred_fallthru
      _
    // Predicated region
    $region78: #{custom_bert_forward.1} parent=1 // pred_check
      _
    $region79: #{custom_bert_forward.1} parent=1 // pred_check_branch
      %73 = sbr.rel (0) target = $region81
    $region80: #{custom_bert_forward.1} parent=1 // pred_region
      _
    $region81: #{custom_bert_forward.1} parent=1 // pred_fallthru
      _
    // Predicated region
    $region82: #{custom_bert_forward.1} parent=1 // pred_check
      _
    $region83: #{custom_bert_forward.1} parent=1 // pred_check_branch
      %75 = sbr.rel (0) target = $region85
    $region84: #{custom_bert_forward.1} parent=1 // pred_region
      _
    $region85: #{custom_bert_forward.1} parent=1 // pred_fallthru
      _
    // Predicated region
    $region86: #{custom_bert_forward.1} parent=1 // pred_check
      _
    $region87: #{custom_bert_forward.1} parent=1 // pred_check_branch
      %77 = sbr.rel (0) target = $region89
    $region88: #{custom_bert_forward.1} parent=1 // pred_region
      _
    $region89: #{custom_bert_forward.1} parent=1 // pred_fallthru
      _
    // Predicated region
    $region90: #{custom_bert_forward.1} parent=1 // pred_check
      _
    $region91: #{custom_bert_forward.1} parent=1 // pred_check_branch
      %79 = sbr.rel (0) target = $region93
    $region92: #{custom_bert_forward.1} parent=1 // pred_region
      _
    $region93: #{custom_bert_forward.1} parent=1 // pred_fallthru
      _
    // Predicated region
    $region94: #{custom_bert_forward.1} parent=1 // pred_check
      _
    $region95: #{custom_bert_forward.1} parent=1 // pred_check_branch
      %81 = sbr.rel (0) target = $region97
    $region96: #{custom_bert_forward.1} parent=1 // pred_region
      _
    $region97: #{custom_bert_forward.1} parent=1 // pred_fallthru
      _
    // Predicated region
    $region98: #{custom_bert_forward.1} parent=1 // pred_check
      _
    $region99: #{custom_bert_forward.1} parent=1 // pred_check_branch
      %83 = sbr.rel (0) target = $region101
    $region100: #{custom_bert_forward.1} parent=1 // pred_region
      _
    $region101: #{custom_bert_forward.1} parent=1 // pred_fallthru
      _
    // Predicated region
    $region102: #{custom_bert_forward.1} parent=1 // pred_check
      _
    $region103: #{custom_bert_forward.1} parent=1 // pred_check_branch
      %85 = sbr.rel (0) target = $region105
    $region104: #{custom_bert_forward.1} parent=1 // pred_region
      _
    $region105: #{custom_bert_forward.1} parent=1 // pred_fallthru
      _
    // Predicated region
    $region106: #{custom_bert_forward.1} parent=1 // pred_check
      _
    $region107: #{custom_bert_forward.1} parent=1 // pred_check_branch
      %87 = sbr.rel (0) target = $region109
    $region108: #{custom_bert_forward.1} parent=1 // pred_region
      _
    $region109: #{custom_bert_forward.1} parent=1 // pred_fallthru
      _
    // Predicated region
    $region110: #{custom_bert_forward.1} parent=1 // pred_check
      _
    $region111: #{custom_bert_forward.1} parent=1 // pred_check_branch
      %89 = sbr.rel (0) target = $region113
    $region112: #{custom_bert_forward.1} parent=1 // pred_region
      _
    $region113: #{custom_bert_forward.1} parent=1 // pred_fallthru
      _
    %v91 = vld [vmem:[%s0] sm:$0xff]
    %v92 = vld [vmem:[%s0 + $0x8] sm:$0xff]
    %v93 = vlaneseq
    %v94 = vand.u32 %v93, 127
    %95 = vset.pattern.permute.xlu0 0
    %96 = vperm.xlu0 %95, %v91
    %v97 = vpop.permute.xlu0 %96
    %98 = vset.pattern.permute.xlu0 0
    %99 = vperm.xlu0 %98, %v92
    %v100 = vpop.permute.xlu0 %99
    %vm101 = vcmp.eq.s32.totalorder %v97, %v94
    %vm102 = vcmp.eq.s32.totalorder %v100, %v94
    %v103 = vsel %vm101, 1.0, 0.0
    %v104 = vsel %vm102, 1.0, 0.0
    %v105 = vpack.c.bf16 %v104, %v103
    %v106 = vld [vmem:[%s1] sm:$0xf]
    %v107 = vld [vmem:[%s1 + $0x4] sm:$0xf]
    %v108 = vld [vmem:[%s1 + $0x8] sm:$0xf]
    %v109 = vld [vmem:[%s1 + $0xc] sm:$0xf]
    %v110 = vld [vmem:[%s1 + $0x10] sm:$0xf]
    %v111 = vld [vmem:[%s1 + $0x14] sm:$0xf]
    %v112 = vld [vmem:[%s1 + $0x18] sm:$0x1]
    %v113 = vld [vmem:[%s2] sm:$0xff]
    %v114 = vld [vmem:[%s2 + $0x8] sm:$0xff]
    %v122 = vunpack.c.l.b16 %v106
    %v123 = vunpack.c.l.b16 %v107
    %v124 = vunpack.c.l.b16 %v108
    %v125 = vunpack.c.l.b16 %v109
    %v126 = vunpack.c.l.b16 %v110
    %v127 = vunpack.c.l.b16 %v111
    %v128 = vunpack.c.l.b16 %v112
    %v129 = vpack.c.b16 %v123, %v122
    %v130 = vpack.c.b16 %v125, %v124
    %v131 = vpack.c.b16 %v127, %v126
    %v132 = vpack.c.b16 %v128, %v128
    %vm136 = vcmask 408576
    %v138 = vsel %vm136, %v105, 0
    %vm140 = vcmask 1040384
    %v142 = vsel %vm140, %v132, 0
    %144 = vmatpush.bf16.msra.mxu0 0
    %145 = vmatpush.bf16.msra.mxu0 0
    %146 = vmatpush.bf16.msra.mxu0 0
    %147 = vmatpush.bf16.msra.mxu0 0
    %148 = vmatpush.bf16.msra.mxu0 %v142
    %149 = vmatpush.bf16.msra.mxu0 %v131
    %150 = vmatpush.bf16.msra.mxu0 %v130
    %151 = vmatpush.bf16.msra.mxu0 %v129
    %152 = vmatmul.bf16.gmra.mxu0 %v138
    %v153 = vpop.f32.mrf.mxu0
    %v154 = vadd.f32 %v113, %v153
    %v155 = vpop.f32.mrf.mxu0
    %v156 = vadd.f32 %v114, %v155
    %157 = vdwg.mxu0
    %v158 = vld [vmem:[%s6] sm:$0x1]
    %v159 = vld [vmem:[%s7] sm:$0x1]
    %vm160 = vcmask 261120
    %v161 = vsel %vm160, %v154, 0.0
    %162 = vadd.xlane.f32.xlu0 %v161
    %v163 = vpop.xlane.xlu0 %162
    %v164 = vsel %vm160, %v156, 0.0
    %165 = vadd.xlane.f32.xlu0 %v164
    %v166 = vpop.xlane.xlu0 %165
    %v167 = vrcp.pop 32.0
    %v168 = vmul.f32 32.0, %v167
    %v169 = vsub.f32 1.0, %v168
    %v170 = vmul.f32 %v167, %v169
    %v171 = vadd.f32 %v167, %v170
    %vm172 = vweird.f32 %v167
    %v173 = vsel %vm172, %v167, %v171
    %v174 = vmul.f32 %v163, %v173
    %v175 = vmul.f32 %v166, %v173
    %v176 = vsub.f32 %v154, %v174
    %v177 = vsub.f32 %v156, %v175
    %v178 = vmul.f32 %v176, %v176
    %v179 = vmul.f32 %v177, %v177
    %v180 = vsel %vm160, %v178, 0.0
    %181 = vadd.xlane.f32.xlu0 %v180
    %v182 = vpop.xlane.xlu0 %181
    %v183 = vsel %vm160, %v179, 0.0
    %184 = vadd.xlane.f32.xlu0 %v183
    %v185 = vpop.xlane.xlu0 %184
    %v186 = vmul.f32 %v182, %v173
    %v187 = vmul.f32 %v185, %v173
    %v188 = vadd.f32 %v186, 1e-12
    %v189 = vadd.f32 %v187, 1e-12
    %v190 = vrsqrt.pop %v188
    %v191 = vmul.f32 %v190, %v188
    %v192 = vmul.f32 %v191, %v190
    %v193 = vmul.f32 0.5, %v192
    %v194 = vsub.f32 1.5, %v193
    %v195 = vmul.f32 %v190, %v194
    %vm196 = vweird.f32 %v188
    %vm197 = vweird.f32 %v190
    %vm198 = vmor %vm196, %vm197
    %v199 = vsel %vm198, %v190, %v195
    %v200 = vrsqrt.pop %v189
    %v201 = vmul.f32 %v200, %v189
    %v202 = vmul.f32 %v201, %v200
    %v203 = vmul.f32 0.5, %v202
    %v204 = vsub.f32 1.5, %v203
    %v205 = vmul.f32 %v200, %v204
    %vm206 = vweird.f32 %v189
    %vm207 = vweird.f32 %v200
    %vm208 = vmor %vm206, %vm207
    %v209 = vsel %vm208, %v200, %v205
    %v210 = vmul.f32 %v176, %v199
    %v211 = vmul.f32 %v177, %v209
    %v213 = vperm.slane %v158, 0
    %v215 = vmul.f32 %v210, %v213
    %v216 = vmul.f32 %v211, %v213
    %v218 = vperm.slane %v159, 0
    %v220 = vadd.f32 %v215, %v218
    %v221 = vadd.f32 %v216, %v218
    %v222 = vld [vmem:[%s4] sm:$0xff]
    %v223 = vld [vmem:[%s4 + $0x8] sm:$0xff]
    %v224 = vld [vmem:[%s4 + $0x10] sm:$0xff]
    %v225 = vld [vmem:[%s4 + $0x18] sm:$0xff]
    %v226 = vld [vmem:[%s5] sm:$0xff]
    %v227 = vld [vmem:[%s5 + $0x8] sm:$0xff]
    %v228 = vld [vmem:[%s5 + $0x10] sm:$0xff]
    %v229 = vld [vmem:[%s5 + $0x18] sm:$0xff]
    %v230 = vld [vmem:[%s3] sm:$0x3]
    %v231 = vperm.slane %v230, 0
    %v232 = vperm.slane %v230, 1
    %v233 = vpack.c.bf16 %v221, %v220
    %v234 = vld [vmem:[%s8] sm:$0xf]
    %v235 = vld [vmem:[%s8 + $0x4] sm:$0xf]
    %v236 = vld [vmem:[%s8 + $0x8] sm:$0xf]
    %v237 = vld [vmem:[%s8 + $0xc] sm:$0xf]
    %v238 = vld [vmem:[%s11] sm:$0x1]
    %v240 = vperm.slane %v238, 0
    %v246 = vunpack.c.l.b16 %v234
    %v247 = vunpack.c.l.b16 %v235
    %v248 = vunpack.c.l.b16 %v236
    %v249 = vunpack.c.l.b16 %v237
    %v250 = vpack.c.b16 %v247, %v246
    %v251 = vpack.c.b16 %v249, %v248
    %v255 = vsel %vm160, %v233, 0
    %257 = vmatpush.bf16.msra.mxu0 0
    %258 = vmatpush.bf16.msra.mxu0 0
    %259 = vmatpush.bf16.msra.mxu0 0
    %260 = vmatpush.bf16.msra.mxu0 0
    %261 = vmatpush.bf16.msra.mxu0 0
    %262 = vmatpush.bf16.msra.mxu0 0
    %263 = vmatpush.bf16.msra.mxu0 %v251
    %264 = vmatpush.bf16.msra.mxu0 %v250
    %265 = vmatmul.bf16.gmra.mxu0 %v255
    %v266 = vpop.f32.mrf.mxu0
    %v267 = vadd.f32 %v240, %v266
    %v268 = vpop.f32.mrf.mxu0
    %v269 = vadd.f32 %v240, %v268
    %270 = vdwg.mxu0
    %v271 = vld [vmem:[%s9] sm:$0xf]
    %v272 = vld [vmem:[%s9 + $0x4] sm:$0xf]
    %v273 = vld [vmem:[%s9 + $0x8] sm:$0xf]
    %v274 = vld [vmem:[%s9 + $0xc] sm:$0xf]
    %v275 = vld [vmem:[%s12] sm:$0x1]
    %v277 = vperm.slane %v275, 0
    %v283 = vunpack.c.l.b16 %v271
    %v284 = vunpack.c.l.b16 %v272
    %v285 = vunpack.c.l.b16 %v273
    %v286 = vunpack.c.l.b16 %v274
    %v287 = vpack.c.b16 %v284, %v283
    %v288 = vpack.c.b16 %v286, %v285
    %291 = vmatpush.bf16.msra.mxu0 0
    %292 = vmatpush.bf16.msra.mxu0 0
    %293 = vmatpush.bf16.msra.mxu0 0
    %294 = vmatpush.bf16.msra.mxu0 0
    %295 = vmatpush.bf16.msra.mxu0 0
    %296 = vmatpush.bf16.msra.mxu0 0
    %297 = vmatpush.bf16.msra.mxu0 %v288
    %298 = vmatpush.bf16.msra.mxu0 %v287
    %299 = vmatmul.bf16.gmra.mxu0 %v255
    %v300 = vpop.f32.mrf.mxu0
    %v301 = vadd.f32 %v277, %v300
    %v302 = vpop.f32.mrf.mxu0
    %v303 = vadd.f32 %v277, %v302
    %304 = vdwg.mxu0
    %v305 = vld [vmem:[%s10] sm:$0xf]
    %v306 = vld [vmem:[%s10 + $0x4] sm:$0xf]
    %v307 = vld [vmem:[%s10 + $0x8] sm:$0xf]
    %v308 = vld [vmem:[%s10 + $0xc] sm:$0xf]
    %v309 = vld [vmem:[%s13] sm:$0x1]
    %v311 = vperm.slane %v309, 0
    %v317 = vunpack.c.l.b16 %v305
    %v318 = vunpack.c.l.b16 %v306
    %v319 = vunpack.c.l.b16 %v307
    %v320 = vunpack.c.l.b16 %v308
    %v321 = vpack.c.b16 %v318, %v317
    %v322 = vpack.c.b16 %v320, %v319
    %325 = vmatpush.bf16.msra.mxu0 0
    %326 = vmatpush.bf16.msra.mxu0 0
    %327 = vmatpush.bf16.msra.mxu0 0
    %328 = vmatpush.bf16.msra.mxu0 0
    %329 = vmatpush.bf16.msra.mxu0 0
    %330 = vmatpush.bf16.msra.mxu0 0
    %331 = vmatpush.bf16.msra.mxu0 %v322
    %332 = vmatpush.bf16.msra.mxu0 %v321
    %333 = vmatmul.bf16.gmra.mxu0 %v255
    %v334 = vpop.f32.mrf.mxu0
    %v335 = vadd.f32 %v311, %v334
    %v336 = vpop.f32.mrf.mxu0
    %v337 = vadd.f32 %v311, %v336
    %338 = vdwg.mxu0
    %v339 = vmul.f32 %v301, %v222
    %v340 = vmul.f32 %v301, %v223
    %v341 = vmul.f32 %v301, %v224
    %v342 = vmul.f32 %v301, %v225
    %v343 = vpack.c.bf16 %v267, %v267
    %v344 = vpack.c.bf16 %v340, %v339
    %v345 = vpack.c.bf16 %v342, %v341
    %v347 = vsel %vm160, %v343, 0
    %v350 = vsel %vm160, %v344, 0
    %v353 = vsel %vm160, %v345, 0
    %355 = vmatpush.bf16.xpose.msra.mxu0 0
    %356 = vmatpush.bf16.xpose.msra.mxu0 0
    %357 = vmatpush.bf16.xpose.msra.mxu0 0
    %358 = vmatpush.bf16.xpose.msra.mxu0 0
    %359 = vmatpush.bf16.xpose.msra.mxu0 0
    %360 = vmatpush.bf16.xpose.msra.mxu0 0
    %361 = vmatpush.bf16.xpose.msra.mxu0 %v353
    %362 = vmatpush.bf16.xpose.msra.mxu0 %v350
    %363 = vmatmul.bf16.gmra.mxu0 %v347
    %v364 = vpop.f32.mrf.mxu0
    %v365 = vadd.f32 0.0, %v364
    %v366 = vpop.f32.mrf.mxu0
    %367 = vdwg.mxu0
    %v368 = vmul.f32 %v365, 0.35355338
    %v369 = vadd.f32 %v368, %v231
    %v370 = vsel %vm160, %v369, -inf
    %371 = vmax.xlane.f32.xlu0 %v370
    %v372 = vpop.xlane.xlu0 %371
    %v373 = vsub.f32 %v369, %v372
    %v374 = vmul.f32 %v373, 1.442695
    %v375 = vpow.pop %v374
    %v377 = vsel %vm160, %v375, 0
    %379 = vmatpush.msra.mxu0 0.0
    %380 = vmatpush.msra.mxu0 0.0
    %381 = vmatpush.msra.mxu0 0.0
    %382 = vmatpush.msra.mxu0 0.0
    %383 = vmatpush.msra.mxu0 0.0
    %384 = vmatpush.msra.mxu0 0.0
    %385 = vmatpush.msra.mxu0 0.0
    %386 = vmatpush.msra.mxu0 0.0
    %387 = vmatpush.msra.mxu0 0.0
    %388 = vmatpush.msra.mxu0 0.0
    %389 = vmatpush.msra.mxu0 0.0
    %390 = vmatpush.msra.mxu0 0.0
    %391 = vmatpush.msra.mxu0 %v229
    %392 = vmatpush.msra.mxu0 %v228
    %393 = vmatpush.msra.mxu0 %v227
    %394 = vmatpush.msra.mxu0 %v226
    %395 = vmatmul.f32.gmra.mxu0 %v377
    %v396 = vpop.f32.mrf.mxu0
    %v397 = vadd.f32 0.0, %v396
    %398 = vdwg.mxu0
    %v399 = vrcp.pop %v397
    %v400 = vmul.f32 %v397, %v399
    %v401 = vsub.f32 1.0, %v400
    %v402 = vmul.f32 %v399, %v401
    %v403 = vadd.f32 %v399, %v402
    %vm404 = vweird.f32 %v397
    %vm405 = vweird.f32 %v399
    %vm406 = vmor %vm404, %vm405
    %v407 = vsel %vm406, %v399, %v403
    %v408 = vand.u32 2147483647, %v397
    %vm409 = vcmp.eq.f32.partialorder %v408, 8.507059e+37
    %v410 = vand.u32 %v397, 2147483648
    %v411 = vor.u32 1.1754944e-38, %v410
    %v412 = vsel %vm409, %v411, %v407
    %v413 = vmul.f32 %v375, %v412
    %v414 = vmul.f32 %v335, %v222
    %v415 = vmul.f32 %v335, %v223
    %v416 = vmul.f32 %v335, %v224
    %v417 = vmul.f32 %v335, %v225
    %v418 = vpack.c.bf16 %v413, %v413
    %v419 = vpack.c.bf16 %v415, %v414
    %v420 = vpack.c.bf16 %v417, %v416
    %v422 = vsel %vm160, %v418, 0
    %424 = vmatpush.bf16.msra.mxu0 0
    %425 = vmatpush.bf16.msra.mxu0 0
    %426 = vmatpush.bf16.msra.mxu0 0
    %427 = vmatpush.bf16.msra.mxu0 0
    %428 = vmatpush.bf16.msra.mxu0 0
    %429 = vmatpush.bf16.msra.mxu0 0
    %430 = vmatpush.bf16.msra.mxu0 %v420
    %431 = vmatpush.bf16.msra.mxu0 %v419
    %432 = vmatmul.bf16.gmra.mxu0 %v422
    %v433 = vpop.f32.mrf.mxu0
    %v434 = vadd.f32 0.0, %v433
    %v435 = vpop.f32.mrf.mxu0
    %436 = vdwg.mxu0
    %v437 = vmul.f32 %v303, %v222
    %v438 = vmul.f32 %v303, %v223
    %v439 = vmul.f32 %v303, %v224
    %v440 = vmul.f32 %v303, %v225
    %v441 = vpack.c.bf16 %v269, %v269
    %v442 = vpack.c.bf16 %v438, %v437
    %v443 = vpack.c.bf16 %v440, %v439
    %v445 = vsel %vm160, %v441, 0
    %v448 = vsel %vm160, %v442, 0
    %v451 = vsel %vm160, %v443, 0
    %453 = vmatpush.bf16.xpose.msra.mxu0 0
    %454 = vmatpush.bf16.xpose.msra.mxu0 0
    %455 = vmatpush.bf16.xpose.msra.mxu0 0
    %456 = vmatpush.bf16.xpose.msra.mxu0 0
    %457 = vmatpush.bf16.xpose.msra.mxu0 0
    %458 = vmatpush.bf16.xpose.msra.mxu0 0
    %459 = vmatpush.bf16.xpose.msra.mxu0 %v451
    %460 = vmatpush.bf16.xpose.msra.mxu0 %v448
    %461 = vmatmul.bf16.gmra.mxu0 %v445
    %v462 = vpop.f32.mrf.mxu0
    %v463 = vadd.f32 0.0, %v462
    %v464 = vpop.f32.mrf.mxu0
    %465 = vdwg.mxu0
    %v466 = vmul.f32 %v463, 0.35355338
    %v467 = vadd.f32 %v466, %v232
    %v468 = vsel %vm160, %v467, -inf
    %469 = vmax.xlane.f32.xlu0 %v468
    %v470 = vpop.xlane.xlu0 %469
    %v471 = vsub.f32 %v467, %v470
    %v472 = vmul.f32 %v471, 1.442695
    %v473 = vpow.pop %v472
    %v475 = vsel %vm160, %v473, 0
    %477 = vmatpush.msra.mxu0 0.0
    %478 = vmatpush.msra.mxu0 0.0
    %479 = vmatpush.msra.mxu0 0.0
    %480 = vmatpush.msra.mxu0 0.0
    %481 = vmatpush.msra.mxu0 0.0
    %482 = vmatpush.msra.mxu0 0.0
    %483 = vmatpush.msra.mxu0 0.0
    %484 = vmatpush.msra.mxu0 0.0
    %485 = vmatpush.msra.mxu0 0.0
    %486 = vmatpush.msra.mxu0 0.0
    %487 = vmatpush.msra.mxu0 0.0
    %488 = vmatpush.msra.mxu0 0.0
    %489 = vmatpush.msra.mxu0 %v229
    %490 = vmatpush.msra.mxu0 %v228
    %491 = vmatpush.msra.mxu0 %v227
    %492 = vmatpush.msra.mxu0 %v226
    %493 = vmatmul.f32.gmra.mxu0 %v475
    %v494 = vpop.f32.mrf.mxu0
    %v495 = vadd.f32 0.0, %v494
    %496 = vdwg.mxu0
    %v497 = vrcp.pop %v495
    %v498 = vmul.f32 %v495, %v497
    %v499 = vsub.f32 1.0, %v498
    %v500 = vmul.f32 %v497, %v499
    %v501 = vadd.f32 %v497, %v500
    %vm502 = vweird.f32 %v495
    %vm503 = vweird.f32 %v497
    %vm504 = vmor %vm502, %vm503
    %v505 = vsel %vm504, %v497, %v501
    %v506 = vand.u32 2147483647, %v495
    %vm507 = vcmp.eq.f32.partialorder %v506, 8.507059e+37
    %v508 = vand.u32 %v495, 2147483648
    %v509 = vor.u32 1.1754944e-38, %v508
    %v510 = vsel %vm507, %v509, %v505
    %v511 = vmul.f32 %v473, %v510
    %v512 = vmul.f32 %v337, %v222
    %v513 = vmul.f32 %v337, %v223
    %v514 = vmul.f32 %v337, %v224
    %v515 = vmul.f32 %v337, %v225
    %v516 = vpack.c.bf16 %v511, %v511
    %v517 = vpack.c.bf16 %v513, %v512
    %v518 = vpack.c.bf16 %v515, %v514
    %v520 = vsel %vm160, %v516, 0
    %522 = vmatpush.bf16.msra.mxu0 0
    %523 = vmatpush.bf16.msra.mxu0 0
    %524 = vmatpush.bf16.msra.mxu0 0
    %525 = vmatpush.bf16.msra.mxu0 0
    %526 = vmatpush.bf16.msra.mxu0 0
    %527 = vmatpush.bf16.msra.mxu0 0
    %528 = vmatpush.bf16.msra.mxu0 %v518
    %529 = vmatpush.bf16.msra.mxu0 %v517
    %530 = vmatmul.bf16.gmra.mxu0 %v520
    %v531 = vpop.f32.mrf.mxu0
    %v532 = vadd.f32 0.0, %v531
    %v533 = vpop.f32.mrf.mxu0
    %534 = vdwg.mxu0
    %v535 = vpack.c.bf16 %v532, %v434
    %v536 = vld [vmem:[%s14] sm:$0xf]
    %v537 = vld [vmem:[%s14 + $0x4] sm:$0xf]
    %v538 = vld [vmem:[%s14 + $0x8] sm:$0xf]
    %v539 = vld [vmem:[%s14 + $0xc] sm:$0xf]
    %v540 = vld [vmem:[%s15] sm:$0x1]
    %v542 = vperm.slane %v540, 0
    %v548 = vunpack.c.l.b16 %v536
    %v549 = vunpack.c.l.b16 %v537
    %v550 = vunpack.c.l.b16 %v538
    %v551 = vunpack.c.l.b16 %v539
    %v552 = vpack.c.b16 %v549, %v548
    %v553 = vpack.c.b16 %v551, %v550
    %v557 = vsel %vm160, %v535, 0
    %559 = vmatpush.bf16.msra.mxu0 0
    %560 = vmatpush.bf16.msra.mxu0 0
    %561 = vmatpush.bf16.msra.mxu0 0
    %562 = vmatpush.bf16.msra.mxu0 0
    %563 = vmatpush.bf16.msra.mxu0 0
    %564 = vmatpush.bf16.msra.mxu0 0
    %565 = vmatpush.bf16.msra.mxu0 %v553
    %566 = vmatpush.bf16.msra.mxu0 %v552
    %567 = vmatmul.bf16.gmra.mxu0 %v557
    %v568 = vpop.f32.mrf.mxu0
    %v569 = vadd.f32 %v542, %v568
    %v570 = vpop.f32.mrf.mxu0
    %v571 = vadd.f32 %v542, %v570
    %572 = vdwg.mxu0
    %v573 = vadd.f32 %v569, %v220
    %v574 = vadd.f32 %v571, %v221
    %v575 = vld [vmem:[%s16] sm:$0x1]
    %v576 = vld [vmem:[%s17] sm:$0x1]
    %v577 = vsel %vm160, %v573, 0.0
    %578 = vadd.xlane.f32.xlu0 %v577
    %v579 = vpop.xlane.xlu0 %578
    %v580 = vsel %vm160, %v574, 0.0
    %581 = vadd.xlane.f32.xlu0 %v580
    %v582 = vpop.xlane.xlu0 %581
    %v583 = vmul.f32 %v579, %v173
    %v584 = vmul.f32 %v582, %v173
    %v585 = vsub.f32 %v573, %v583
    %v586 = vsub.f32 %v574, %v584
    %v587 = vmul.f32 %v585, %v585
    %v588 = vmul.f32 %v586, %v586
    %v589 = vsel %vm160, %v587, 0.0
    %590 = vadd.xlane.f32.xlu0 %v589
    %v591 = vpop.xlane.xlu0 %590
    %v592 = vsel %vm160, %v588, 0.0
    %593 = vadd.xlane.f32.xlu0 %v592
    %v594 = vpop.xlane.xlu0 %593
    %v595 = vmul.f32 %v591, %v173
    %v596 = vmul.f32 %v594, %v173
    %v597 = vadd.f32 %v595, 1e-12
    %v598 = vadd.f32 %v596, 1e-12
    %v599 = vrsqrt.pop %v597
    %v600 = vmul.f32 %v599, %v597
    %v601 = vmul.f32 %v600, %v599
    %v602 = vmul.f32 0.5, %v601
    %v603 = vsub.f32 1.5, %v602
    %v604 = vmul.f32 %v599, %v603
    %vm605 = vweird.f32 %v597
    %vm606 = vweird.f32 %v599
    %vm607 = vmor %vm605, %vm606
    %v608 = vsel %vm607, %v599, %v604
    %v609 = vrsqrt.pop %v598
    %v610 = vmul.f32 %v609, %v598
    %v611 = vmul.f32 %v610, %v609
    %v612 = vmul.f32 0.5, %v611
    %v613 = vsub.f32 1.5, %v612
    %v614 = vmul.f32 %v609, %v613
    %vm615 = vweird.f32 %v598
    %vm616 = vweird.f32 %v609
    %vm617 = vmor %vm615, %vm616
    %v618 = vsel %vm617, %v609, %v614
    %v619 = vmul.f32 %v585, %v608
    %v620 = vmul.f32 %v586, %v618
    %v622 = vperm.slane %v575, 0
    %v624 = vmul.f32 %v619, %v622
    %v625 = vmul.f32 %v620, %v622
    %v627 = vperm.slane %v576, 0
    %v629 = vadd.f32 %v624, %v627
    %v630 = vadd.f32 %v625, %v627
    %v631 = vpack.c.bf16 %v630, %v629
    %v632 = vld [vmem:[%s18] sm:$0xf]
    %v633 = vld [vmem:[%s18 + $0x4] sm:$0xf]
    %v634 = vld [vmem:[%s18 + $0x8] sm:$0xf]
    %v635 = vld [vmem:[%s18 + $0xc] sm:$0xf]
    %v636 = vld [vmem:[%s19] sm:$0x1]
    %v638 = vperm.slane %v636, 0
    %v644 = vunpack.c.l.b16 %v632
    %v645 = vunpack.c.l.b16 %v633
    %v646 = vunpack.c.l.b16 %v634
    %v647 = vunpack.c.l.b16 %v635
    %v648 = vpack.c.b16 %v645, %v644
    %v649 = vpack.c.b16 %v647, %v646
    %v653 = vsel %vm160, %v631, 0
    %655 = vmatpush.bf16.msra.mxu0 0
    %656 = vmatpush.bf16.msra.mxu0 0
    %657 = vmatpush.bf16.msra.mxu0 0
    %658 = vmatpush.bf16.msra.mxu0 0
    %659 = vmatpush.bf16.msra.mxu0 0
    %660 = vmatpush.bf16.msra.mxu0 0
    %661 = vmatpush.bf16.msra.mxu0 %v649
    %662 = vmatpush.bf16.msra.mxu0 %v648
    %663 = vmatmul.bf16.gmra.mxu0 %v653
    %v664 = vpop.f32.mrf.mxu0
    %v665 = vadd.f32 %v638, %v664
    %v666 = vpop.f32.mrf.mxu0
    %v667 = vadd.f32 %v638, %v666
    %668 = vdwg.mxu0
    %v669 = vmul.f32 %v665, 0.5
    %v670 = vmul.f32 %v667, 0.5
    %v671 = vmul.f32 %v665, 0.70710677
    %v672 = vmul.f32 %v667, 0.70710677
    %v673 = vmul.f32 %v671, %v671
    %v674 = vmin.f32 16.0, %v673
    %v675 = vmul.f32 %v674, 2.1237322e-06
    %v676 = vadd.f32 %v675, 0.00028619796
    %v677 = vmul.f32 %v674, %v676
    %v678 = vadd.f32 %v677, 0.0036580483
    %v679 = vmul.f32 %v674, %v678
    %v680 = vadd.f32 %v679, 0.05243302
    %v681 = vmul.f32 %v674, %v680
    %v682 = vadd.f32 %v681, 0.18741608
    %v683 = vmul.f32 %v674, %v682
    %v684 = vadd.f32 %v683, 1.1283791
    %v685 = vmul.f32 %v671, %v684
    %v686 = vmul.f32 %v674, 3.8918573e-05
    %v687 = vadd.f32 %v686, 0.001143296
    %v688 = vmul.f32 %v674, %v687
    %v689 = vadd.f32 %v688, 0.014752088
    %v690 = vmul.f32 %v674, %v689
    %v691 = vadd.f32 %v690, 0.112945676
    %v692 = vmul.f32 %v674, %v691
    %v693 = vadd.f32 %v692, 0.4994258
    %v694 = vmul.f32 %v674, %v693
    %v695 = vadd.f32 %v694, 1.0
    %v696 = vrcp.pop %v695
    %v697 = vmul.f32 %v695, %v696
    %v698 = vsub.f32 1.0, %v697
    %v699 = vmul.f32 %v696, %v698
    %v700 = vadd.f32 %v696, %v699
    %vm701 = vweird.f32 %v695
    %vm702 = vweird.f32 %v696
    %vm703 = vmor %vm701, %vm702
    %v704 = vsel %vm703, %v696, %v700
    %v705 = vand.u32 2147483647, %v695
    %vm706 = vcmp.eq.f32.partialorder %v705, 8.507059e+37
    %v707 = vand.u32 %v695, 2147483648
    %v708 = vor.u32 1.1754944e-38, %v707
    %v709 = vsel %vm706, %v708, %v704
    %v710 = vmul.f32 %v685, %v709
    %v711 = vmin.f32 %v710, 1.0
    %v712 = vmax.f32 %v711, -1.0
    %v713 = vmul.f32 %v672, %v672
    %v714 = vmin.f32 16.0, %v713
    %v715 = vmul.f32 %v714, 2.1237322e-06
    %v716 = vadd.f32 %v715, 0.00028619796
    %v717 = vmul.f32 %v714, %v716
    %v718 = vadd.f32 %v717, 0.0036580483
    %v719 = vmul.f32 %v714, %v718
    %v720 = vadd.f32 %v719, 0.05243302
    %v721 = vmul.f32 %v714, %v720
    %v722 = vadd.f32 %v721, 0.18741608
    %v723 = vmul.f32 %v714, %v722
    %v724 = vadd.f32 %v723, 1.1283791
    %v725 = vmul.f32 %v672, %v724
    %v726 = vmul.f32 %v714, 3.8918573e-05
    %v727 = vadd.f32 %v726, 0.001143296
    %v728 = vmul.f32 %v714, %v727
    %v729 = vadd.f32 %v728, 0.014752088
    %v730 = vmul.f32 %v714, %v729
    %v731 = vadd.f32 %v730, 0.112945676
    %v732 = vmul.f32 %v714, %v731
    %v733 = vadd.f32 %v732, 0.4994258
    %v734 = vmul.f32 %v714, %v733
    %v735 = vadd.f32 %v734, 1.0
    %v736 = vrcp.pop %v735
    %v737 = vmul.f32 %v735, %v736
    %v738 = vsub.f32 1.0, %v737
    %v739 = vmul.f32 %v736, %v738
    %v740 = vadd.f32 %v736, %v739
    %vm741 = vweird.f32 %v735
    %vm742 = vweird.f32 %v736
    %vm743 = vmor %vm741, %vm742
    %v744 = vsel %vm743, %v736, %v740
    %v745 = vand.u32 2147483647, %v735
    %vm746 = vcmp.eq.f32.partialorder %v745, 8.507059e+37
    %v747 = vand.u32 %v735, 2147483648
    %v748 = vor.u32 1.1754944e-38, %v747
    %v749 = vsel %vm746, %v748, %v744
    %v750 = vmul.f32 %v725, %v749
    %v751 = vmin.f32 %v750, 1.0
    %v752 = vmax.f32 %v751, -1.0
    %v753 = vadd.f32 %v712, 1.0
    %v754 = vadd.f32 %v752, 1.0
    %v755 = vmul.f32 %v669, %v753
    %v756 = vmul.f32 %v670, %v754
    %v757 = vpack.c.bf16 %v756, %v755
    %v758 = vld [vmem:[%s20] sm:$0xf]
    %v759 = vld [vmem:[%s20 + $0x4] sm:$0xf]
    %v760 = vld [vmem:[%s20 + $0x8] sm:$0xf]
    %v761 = vld [vmem:[%s20 + $0xc] sm:$0xf]
    %v762 = vld [vmem:[%s20 + $0x10] sm:$0xf]
    %v763 = vld [vmem:[%s20 + $0x14] sm:$0xf]
    %v764 = vld [vmem:[%s20 + $0x18] sm:$0xf]
    %v765 = vld [vmem:[%s20 + $0x1c] sm:$0xf]
    %v766 = vld [vmem:[%s21] sm:$0x1]
    %v768 = vperm.slane %v766, 0
    %v778 = vunpack.c.l.b16 %v758
    %v779 = vunpack.c.l.b16 %v759
    %v780 = vunpack.c.l.b16 %v760
    %v781 = vunpack.c.l.b16 %v761
    %v782 = vunpack.c.l.b16 %v762
    %v783 = vunpack.c.l.b16 %v763
    %v784 = vunpack.c.l.b16 %v764
    %v785 = vunpack.c.l.b16 %v765
    %v786 = vpack.c.b16 %v779, %v778
    %v787 = vpack.c.b16 %v781, %v780
    %v788 = vpack.c.b16 %v783, %v782
    %v789 = vpack.c.b16 %v785, %v784
    %vm794 = vcmask 523264
    %v796 = vsel %vm794, %v757, 0
    %798 = vmatpush.bf16.msra.mxu0 0
    %799 = vmatpush.bf16.msra.mxu0 0
    %800 = vmatpush.bf16.msra.mxu0 0
    %801 = vmatpush.bf16.msra.mxu0 0
    %802 = vmatpush.bf16.msra.mxu0 %v789
    %803 = vmatpush.bf16.msra.mxu0 %v788
    %804 = vmatpush.bf16.msra.mxu0 %v787
    %805 = vmatpush.bf16.msra.mxu0 %v786
    %806 = vmatmul.bf16.gmra.mxu0 %v796
    %v807 = vpop.f32.mrf.mxu0
    %v808 = vadd.f32 %v768, %v807
    %v809 = vpop.f32.mrf.mxu0
    %v810 = vadd.f32 %v768, %v809
    %811 = vdwg.mxu0
    %v812 = vadd.f32 %v808, %v629
    %v813 = vadd.f32 %v810, %v630
    %v814 = vld [vmem:[%s22] sm:$0x1]
    %v815 = vld [vmem:[%s23] sm:$0x1]
    %v816 = vsel %vm160, %v812, 0.0
    %817 = vadd.xlane.f32.xlu0 %v816
    %v818 = vpop.xlane.xlu0 %817
    %v819 = vsel %vm160, %v813, 0.0
    %820 = vadd.xlane.f32.xlu0 %v819
    %v821 = vpop.xlane.xlu0 %820
    %v822 = vmul.f32 %v818, %v173
    %v823 = vmul.f32 %v821, %v173
    %v824 = vsub.f32 %v812, %v822
    %v825 = vsub.f32 %v813, %v823
    %v826 = vmul.f32 %v824, %v824
    %v827 = vmul.f32 %v825, %v825
    %v828 = vsel %vm160, %v826, 0.0
    %829 = vadd.xlane.f32.xlu0 %v828
    %v830 = vpop.xlane.xlu0 %829
    %v831 = vsel %vm160, %v827, 0.0
    %832 = vadd.xlane.f32.xlu0 %v831
    %v833 = vpop.xlane.xlu0 %832
    %v834 = vmul.f32 %v830, %v173
    %v835 = vmul.f32 %v833, %v173
    %v836 = vadd.f32 %v834, 1e-12
    %v837 = vadd.f32 %v835, 1e-12
    %v838 = vrsqrt.pop %v836
    %v839 = vmul.f32 %v838, %v836
    %v840 = vmul.f32 %v839, %v838
    %v841 = vmul.f32 0.5, %v840
    %v842 = vsub.f32 1.5, %v841
    %v843 = vmul.f32 %v838, %v842
    %vm844 = vweird.f32 %v836
    %vm845 = vweird.f32 %v838
    %vm846 = vmor %vm844, %vm845
    %v847 = vsel %vm846, %v838, %v843
    %v848 = vrsqrt.pop %v837
    %v849 = vmul.f32 %v848, %v837
    %v850 = vmul.f32 %v849, %v848
    %v851 = vmul.f32 0.5, %v850
    %v852 = vsub.f32 1.5, %v851
    %v853 = vmul.f32 %v848, %v852
    %vm854 = vweird.f32 %v837
    %vm855 = vweird.f32 %v848
    %vm856 = vmor %vm854, %vm855
    %v857 = vsel %vm856, %v848, %v853
    %v858 = vmul.f32 %v824, %v847
    %v859 = vmul.f32 %v825, %v857
    %v861 = vperm.slane %v814, 0
    %v863 = vmul.f32 %v858, %v861
    %v864 = vmul.f32 %v859, %v861
    %v866 = vperm.slane %v815, 0
    %v868 = vadd.f32 %v863, %v866
    %v869 = vadd.f32 %v864, %v866
    %v870 = vpack.c.bf16 %v869, %v868
    %s871 = scalar_lea.vmem %s8, 16
    %v872 = vld [vmem:[%s871] sm:$0xf]
    %v873 = vld [vmem:[%s871 + $0x4] sm:$0xf]
    %v874 = vld [vmem:[%s871 + $0x8] sm:$0xf]
    %v875 = vld [vmem:[%s871 + $0xc] sm:$0xf]
    %s876 = scalar_lea.vmem %s11, 1
    %v877 = vld [vmem:[%s876] sm:$0x1]
    %v879 = vperm.slane %v877, 0
    %v885 = vunpack.c.l.b16 %v872
    %v886 = vunpack.c.l.b16 %v873
    %v887 = vunpack.c.l.b16 %v874
    %v888 = vunpack.c.l.b16 %v875
    %v889 = vpack.c.b16 %v886, %v885
    %v890 = vpack.c.b16 %v888, %v887
    %v894 = vsel %vm160, %v870, 0
    %896 = vmatpush.bf16.msra.mxu0 0
    %897 = vmatpush.bf16.msra.mxu0 0
    %898 = vmatpush.bf16.msra.mxu0 0
    %899 = vmatpush.bf16.msra.mxu0 0
    %900 = vmatpush.bf16.msra.mxu0 0
    %901 = vmatpush.bf16.msra.mxu0 0
    %902 = vmatpush.bf16.msra.mxu0 %v890
    %903 = vmatpush.bf16.msra.mxu0 %v889
    %904 = vmatmul.bf16.gmra.mxu0 %v894
    %v905 = vpop.f32.mrf.mxu0
    %v906 = vadd.f32 %v879, %v905
    %v907 = vpop.f32.mrf.mxu0
    %v908 = vadd.f32 %v879, %v907
    %909 = vdwg.mxu0
    %s910 = scalar_lea.vmem %s9, 16
    %v911 = vld [vmem:[%s910] sm:$0xf]
    %v912 = vld [vmem:[%s910 + $0x4] sm:$0xf]
    %v913 = vld [vmem:[%s910 + $0x8] sm:$0xf]
    %v914 = vld [vmem:[%s910 + $0xc] sm:$0xf]
    %s915 = scalar_lea.vmem %s12, 1
    %v916 = vld [vmem:[%s915] sm:$0x1]
    %v918 = vperm.slane %v916, 0
    %v924 = vunpack.c.l.b16 %v911
    %v925 = vunpack.c.l.b16 %v912
    %v926 = vunpack.c.l.b16 %v913
    %v927 = vunpack.c.l.b16 %v914
    %v928 = vpack.c.b16 %v925, %v924
    %v929 = vpack.c.b16 %v927, %v926
    %932 = vmatpush.bf16.msra.mxu0 0
    %933 = vmatpush.bf16.msra.mxu0 0
    %934 = vmatpush.bf16.msra.mxu0 0
    %935 = vmatpush.bf16.msra.mxu0 0
    %936 = vmatpush.bf16.msra.mxu0 0
    %937 = vmatpush.bf16.msra.mxu0 0
    %938 = vmatpush.bf16.msra.mxu0 %v929
    %939 = vmatpush.bf16.msra.mxu0 %v928
    %940 = vmatmul.bf16.gmra.mxu0 %v894
    %v941 = vpop.f32.mrf.mxu0
    %v942 = vadd.f32 %v918, %v941
    %v943 = vpop.f32.mrf.mxu0
    %v944 = vadd.f32 %v918, %v943
    %945 = vdwg.mxu0
    %s946 = scalar_lea.vmem %s10, 16
    %v947 = vld [vmem:[%s946] sm:$0xf]
    %v948 = vld [vmem:[%s946 + $0x4] sm:$0xf]
    %v949 = vld [vmem:[%s946 + $0x8] sm:$0xf]
    %v950 = vld [vmem:[%s946 + $0xc] sm:$0xf]
    %s951 = scalar_lea.vmem %s13, 1
    %v952 = vld [vmem:[%s951] sm:$0x1]
    %v954 = vperm.slane %v952, 0
    %v960 = vunpack.c.l.b16 %v947
    %v961 = vunpack.c.l.b16 %v948
    %v962 = vunpack.c.l.b16 %v949
    %v963 = vunpack.c.l.b16 %v950
    %v964 = vpack.c.b16 %v961, %v960
    %v965 = vpack.c.b16 %v963, %v962
    %968 = vmatpush.bf16.msra.mxu0 0
    %969 = vmatpush.bf16.msra.mxu0 0
    %970 = vmatpush.bf16.msra.mxu0 0
    %971 = vmatpush.bf16.msra.mxu0 0
    %972 = vmatpush.bf16.msra.mxu0 0
    %973 = vmatpush.bf16.msra.mxu0 0
    %974 = vmatpush.bf16.msra.mxu0 %v965
    %975 = vmatpush.bf16.msra.mxu0 %v964
    %976 = vmatmul.bf16.gmra.mxu0 %v894
    %v977 = vpop.f32.mrf.mxu0
    %v978 = vadd.f32 %v954, %v977
    %v979 = vpop.f32.mrf.mxu0
    %v980 = vadd.f32 %v954, %v979
    %981 = vdwg.mxu0
    %v982 = vmul.f32 %v942, %v222
    %v983 = vmul.f32 %v942, %v223
    %v984 = vmul.f32 %v942, %v224
    %v985 = vmul.f32 %v942, %v225
    %v986 = vpack.c.bf16 %v906, %v906
    %v987 = vpack.c.bf16 %v983, %v982
    %v988 = vpack.c.bf16 %v985, %v984
    %v990 = vsel %vm160, %v986, 0
    %v993 = vsel %vm160, %v987, 0
    %v996 = vsel %vm160, %v988, 0
    %998 = vmatpush.bf16.xpose.msra.mxu0 0
    %999 = vmatpush.bf16.xpose.msra.mxu0 0
    %1000 = vmatpush.bf16.xpose.msra.mxu0 0
    %1001 = vmatpush.bf16.xpose.msra.mxu0 0
    %1002 = vmatpush.bf16.xpose.msra.mxu0 0
    %1003 = vmatpush.bf16.xpose.msra.mxu0 0
    %1004 = vmatpush.bf16.xpose.msra.mxu0 %v996
    %1005 = vmatpush.bf16.xpose.msra.mxu0 %v993
    %1006 = vmatmul.bf16.gmra.mxu0 %v990
    %v1007 = vpop.f32.mrf.mxu0
    %v1008 = vadd.f32 0.0, %v1007
    %v1009 = vpop.f32.mrf.mxu0
    %1010 = vdwg.mxu0
    %v1011 = vmul.f32 %v1008, 0.35355338
    %v1012 = vadd.f32 %v1011, %v231
    %v1013 = vsel %vm160, %v1012, -inf
    %1014 = vmax.xlane.f32.xlu0 %v1013
    %v1015 = vpop.xlane.xlu0 %1014
    %v1016 = vsub.f32 %v1012, %v1015
    %v1017 = vmul.f32 %v1016, 1.442695
    %v1018 = vpow.pop %v1017
    %v1020 = vsel %vm160, %v1018, 0
    %1022 = vmatpush.msra.mxu0 0.0
    %1023 = vmatpush.msra.mxu0 0.0
    %1024 = vmatpush.msra.mxu0 0.0
    %1025 = vmatpush.msra.mxu0 0.0
    %1026 = vmatpush.msra.mxu0 0.0
    %1027 = vmatpush.msra.mxu0 0.0
    %1028 = vmatpush.msra.mxu0 0.0
    %1029 = vmatpush.msra.mxu0 0.0
    %1030 = vmatpush.msra.mxu0 0.0
    %1031 = vmatpush.msra.mxu0 0.0
    %1032 = vmatpush.msra.mxu0 0.0
    %1033 = vmatpush.msra.mxu0 0.0
    %1034 = vmatpush.msra.mxu0 %v229
    %1035 = vmatpush.msra.mxu0 %v228
    %1036 = vmatpush.msra.mxu0 %v227
    %1037 = vmatpush.msra.mxu0 %v226
    %1038 = vmatmul.f32.gmra.mxu0 %v1020
    %v1039 = vpop.f32.mrf.mxu0
    %v1040 = vadd.f32 0.0, %v1039
    %1041 = vdwg.mxu0
    %v1042 = vrcp.pop %v1040
    %v1043 = vmul.f32 %v1040, %v1042
    %v1044 = vsub.f32 1.0, %v1043
    %v1045 = vmul.f32 %v1042, %v1044
    %v1046 = vadd.f32 %v1042, %v1045
    %vm1047 = vweird.f32 %v1040
    %vm1048 = vweird.f32 %v1042
    %vm1049 = vmor %vm1047, %vm1048
    %v1050 = vsel %vm1049, %v1042, %v1046
    %v1051 = vand.u32 2147483647, %v1040
    %vm1052 = vcmp.eq.f32.partialorder %v1051, 8.507059e+37
    %v1053 = vand.u32 %v1040, 2147483648
    %v1054 = vor.u32 1.1754944e-38, %v1053
    %v1055 = vsel %vm1052, %v1054, %v1050
    %v1056 = vmul.f32 %v1018, %v1055
    %v1057 = vmul.f32 %v978, %v222
    %v1058 = vmul.f32 %v978, %v223
    %v1059 = vmul.f32 %v978, %v224
    %v1060 = vmul.f32 %v978, %v225
    %v1061 = vpack.c.bf16 %v1056, %v1056
    %v1062 = vpack.c.bf16 %v1058, %v1057
    %v1063 = vpack.c.bf16 %v1060, %v1059
    %v1065 = vsel %vm160, %v1061, 0
    %1067 = vmatpush.bf16.msra.mxu0 0
    %1068 = vmatpush.bf16.msra.mxu0 0
    %1069 = vmatpush.bf16.msra.mxu0 0
    %1070 = vmatpush.bf16.msra.mxu0 0
    %1071 = vmatpush.bf16.msra.mxu0 0
    %1072 = vmatpush.bf16.msra.mxu0 0
    %1073 = vmatpush.bf16.msra.mxu0 %v1063
    %1074 = vmatpush.bf16.msra.mxu0 %v1062
    %1075 = vmatmul.bf16.gmra.mxu0 %v1065
    %v1076 = vpop.f32.mrf.mxu0
    %v1077 = vadd.f32 0.0, %v1076
    %v1078 = vpop.f32.mrf.mxu0
    %1079 = vdwg.mxu0
    %v1080 = vmul.f32 %v944, %v222
    %v1081 = vmul.f32 %v944, %v223
    %v1082 = vmul.f32 %v944, %v224
    %v1083 = vmul.f32 %v944, %v225
    %v1084 = vpack.c.bf16 %v908, %v908
    %v1085 = vpack.c.bf16 %v1081, %v1080
    %v1086 = vpack.c.bf16 %v1083, %v1082
    %v1088 = vsel %vm160, %v1084, 0
    %v1091 = vsel %vm160, %v1085, 0
    %v1094 = vsel %vm160, %v1086, 0
    %1096 = vmatpush.bf16.xpose.msra.mxu0 0
    %1097 = vmatpush.bf16.xpose.msra.mxu0 0
    %1098 = vmatpush.bf16.xpose.msra.mxu0 0
    %1099 = vmatpush.bf16.xpose.msra.mxu0 0
    %1100 = vmatpush.bf16.xpose.msra.mxu0 0
    %1101 = vmatpush.bf16.xpose.msra.mxu0 0
    %1102 = vmatpush.bf16.xpose.msra.mxu0 %v1094
    %1103 = vmatpush.bf16.xpose.msra.mxu0 %v1091
    %1104 = vmatmul.bf16.gmra.mxu0 %v1088
    %v1105 = vpop.f32.mrf.mxu0
    %v1106 = vadd.f32 0.0, %v1105
    %v1107 = vpop.f32.mrf.mxu0
    %1108 = vdwg.mxu0
    %v1109 = vmul.f32 %v1106, 0.35355338
    %v1110 = vadd.f32 %v1109, %v232
    %v1111 = vsel %vm160, %v1110, -inf
    %1112 = vmax.xlane.f32.xlu0 %v1111
    %v1113 = vpop.xlane.xlu0 %1112
    %v1114 = vsub.f32 %v1110, %v1113
    %v1115 = vmul.f32 %v1114, 1.442695
    %v1116 = vpow.pop %v1115
    %v1118 = vsel %vm160, %v1116, 0
    %1120 = vmatpush.msra.mxu0 0.0
    %1121 = vmatpush.msra.mxu0 0.0
    %1122 = vmatpush.msra.mxu0 0.0
    %1123 = vmatpush.msra.mxu0 0.0
    %1124 = vmatpush.msra.mxu0 0.0
    %1125 = vmatpush.msra.mxu0 0.0
    %1126 = vmatpush.msra.mxu0 0.0
    %1127 = vmatpush.msra.mxu0 0.0
    %1128 = vmatpush.msra.mxu0 0.0
    %1129 = vmatpush.msra.mxu0 0.0
    %1130 = vmatpush.msra.mxu0 0.0
    %1131 = vmatpush.msra.mxu0 0.0
    %1132 = vmatpush.msra.mxu0 %v229
    %1133 = vmatpush.msra.mxu0 %v228
    %1134 = vmatpush.msra.mxu0 %v227
    %1135 = vmatpush.msra.mxu0 %v226
    %1136 = vmatmul.f32.gmra.mxu0 %v1118
    %v1137 = vpop.f32.mrf.mxu0
    %v1138 = vadd.f32 0.0, %v1137
    %1139 = vdwg.mxu0
    %v1140 = vrcp.pop %v1138
    %v1141 = vmul.f32 %v1138, %v1140
    %v1142 = vsub.f32 1.0, %v1141
    %v1143 = vmul.f32 %v1140, %v1142
    %v1144 = vadd.f32 %v1140, %v1143
    %vm1145 = vweird.f32 %v1138
    %vm1146 = vweird.f32 %v1140
    %vm1147 = vmor %vm1145, %vm1146
    %v1148 = vsel %vm1147, %v1140, %v1144
    %v1149 = vand.u32 2147483647, %v1138
    %vm1150 = vcmp.eq.f32.partialorder %v1149, 8.507059e+37
    %v1151 = vand.u32 %v1138, 2147483648
    %v1152 = vor.u32 1.1754944e-38, %v1151
    %v1153 = vsel %vm1150, %v1152, %v1148
    %v1154 = vmul.f32 %v1116, %v1153
    %v1155 = vmul.f32 %v980, %v222
    %v1156 = vmul.f32 %v980, %v223
    %v1157 = vmul.f32 %v980, %v224
    %v1158 = vmul.f32 %v980, %v225
    %v1159 = vpack.c.bf16 %v1154, %v1154
    %v1160 = vpack.c.bf16 %v1156, %v1155
    %v1161 = vpack.c.bf16 %v1158, %v1157
    %v1163 = vsel %vm160, %v1159, 0
    %1165 = vmatpush.bf16.msra.mxu0 0
    %1166 = vmatpush.bf16.msra.mxu0 0
    %1167 = vmatpush.bf16.msra.mxu0 0
    %1168 = vmatpush.bf16.msra.mxu0 0
    %1169 = vmatpush.bf16.msra.mxu0 0
    %1170 = vmatpush.bf16.msra.mxu0 0
    %1171 = vmatpush.bf16.msra.mxu0 %v1161
    %1172 = vmatpush.bf16.msra.mxu0 %v1160
    %1173 = vmatmul.bf16.gmra.mxu0 %v1163
    %v1174 = vpop.f32.mrf.mxu0
    %v1175 = vadd.f32 0.0, %v1174
    %v1176 = vpop.f32.mrf.mxu0
    %1177 = vdwg.mxu0
    %v1178 = vpack.c.bf16 %v1175, %v1077
    %s1179 = scalar_lea.vmem %s14, 16
    %v1180 = vld [vmem:[%s1179] sm:$0xf]
    %v1181 = vld [vmem:[%s1179 + $0x4] sm:$0xf]
    %v1182 = vld [vmem:[%s1179 + $0x8] sm:$0xf]
    %v1183 = vld [vmem:[%s1179 + $0xc] sm:$0xf]
    %s1184 = scalar_lea.vmem %s15, 1
    %v1185 = vld [vmem:[%s1184] sm:$0x1]
    %v1187 = vperm.slane %v1185, 0
    %v1193 = vunpack.c.l.b16 %v1180
    %v1194 = vunpack.c.l.b16 %v1181
    %v1195 = vunpack.c.l.b16 %v1182
    %v1196 = vunpack.c.l.b16 %v1183
    %v1197 = vpack.c.b16 %v1194, %v1193
    %v1198 = vpack.c.b16 %v1196, %v1195
    %v1202 = vsel %vm160, %v1178, 0
    %1204 = vmatpush.bf16.msra.mxu0 0
    %1205 = vmatpush.bf16.msra.mxu0 0
    %1206 = vmatpush.bf16.msra.mxu0 0
    %1207 = vmatpush.bf16.msra.mxu0 0
    %1208 = vmatpush.bf16.msra.mxu0 0
    %1209 = vmatpush.bf16.msra.mxu0 0
    %1210 = vmatpush.bf16.msra.mxu0 %v1198
    %1211 = vmatpush.bf16.msra.mxu0 %v1197
    %1212 = vmatmul.bf16.gmra.mxu0 %v1202
    %v1213 = vpop.f32.mrf.mxu0
    %v1214 = vadd.f32 %v1187, %v1213
    %v1215 = vpop.f32.mrf.mxu0
    %v1216 = vadd.f32 %v1187, %v1215
    %1217 = vdwg.mxu0
    %v1218 = vadd.f32 %v1214, %v868
    %v1219 = vadd.f32 %v1216, %v869
    %s1220 = scalar_lea.vmem %s16, 1
    %v1221 = vld [vmem:[%s1220] sm:$0x1]
    %s1222 = scalar_lea.vmem %s17, 1
    %v1223 = vld [vmem:[%s1222] sm:$0x1]
    %v1224 = vsel %vm160, %v1218, 0.0
    %1225 = vadd.xlane.f32.xlu0 %v1224
    %v1226 = vpop.xlane.xlu0 %1225
    %v1227 = vsel %vm160, %v1219, 0.0
    %1228 = vadd.xlane.f32.xlu0 %v1227
    %v1229 = vpop.xlane.xlu0 %1228
    %v1230 = vmul.f32 %v1226, %v173
    %v1231 = vmul.f32 %v1229, %v173
    %v1232 = vsub.f32 %v1218, %v1230
    %v1233 = vsub.f32 %v1219, %v1231
    %v1234 = vmul.f32 %v1232, %v1232
    %v1235 = vmul.f32 %v1233, %v1233
    %v1236 = vsel %vm160, %v1234, 0.0
    %1237 = vadd.xlane.f32.xlu0 %v1236
    %v1238 = vpop.xlane.xlu0 %1237
    %v1239 = vsel %vm160, %v1235, 0.0
    %1240 = vadd.xlane.f32.xlu0 %v1239
    %v1241 = vpop.xlane.xlu0 %1240
    %v1242 = vmul.f32 %v1238, %v173
    %v1243 = vmul.f32 %v1241, %v173
    %v1244 = vadd.f32 %v1242, 1e-12
    %v1245 = vadd.f32 %v1243, 1e-12
    %v1246 = vrsqrt.pop %v1244
    %v1247 = vmul.f32 %v1246, %v1244
    %v1248 = vmul.f32 %v1247, %v1246
    %v1249 = vmul.f32 0.5, %v1248
    %v1250 = vsub.f32 1.5, %v1249
    %v1251 = vmul.f32 %v1246, %v1250
    %vm1252 = vweird.f32 %v1244
    %vm1253 = vweird.f32 %v1246
    %vm1254 = vmor %vm1252, %vm1253
    %v1255 = vsel %vm1254, %v1246, %v1251
    %v1256 = vrsqrt.pop %v1245
    %v1257 = vmul.f32 %v1256, %v1245
    %v1258 = vmul.f32 %v1257, %v1256
    %v1259 = vmul.f32 0.5, %v1258
    %v1260 = vsub.f32 1.5, %v1259
    %v1261 = vmul.f32 %v1256, %v1260
    %vm1262 = vweird.f32 %v1245
    %vm1263 = vweird.f32 %v1256
    %vm1264 = vmor %vm1262, %vm1263
    %v1265 = vsel %vm1264, %v1256, %v1261
    %v1266 = vmul.f32 %v1232, %v1255
    %v1267 = vmul.f32 %v1233, %v1265
    %v1269 = vperm.slane %v1221, 0
    %v1271 = vmul.f32 %v1266, %v1269
    %v1272 = vmul.f32 %v1267, %v1269
    %v1274 = vperm.slane %v1223, 0
    %v1276 = vadd.f32 %v1271, %v1274
    %v1277 = vadd.f32 %v1272, %v1274
    %v1278 = vpack.c.bf16 %v1277, %v1276
    %s1279 = scalar_lea.vmem %s18, 16
    %v1280 = vld [vmem:[%s1279] sm:$0xf]
    %v1281 = vld [vmem:[%s1279 + $0x4] sm:$0xf]
    %v1282 = vld [vmem:[%s1279 + $0x8] sm:$0xf]
    %v1283 = vld [vmem:[%s1279 + $0xc] sm:$0xf]
    %s1284 = scalar_lea.vmem %s19, 1
    %v1285 = vld [vmem:[%s1284] sm:$0x1]
    %v1287 = vperm.slane %v1285, 0
    %v1293 = vunpack.c.l.b16 %v1280
    %v1294 = vunpack.c.l.b16 %v1281
    %v1295 = vunpack.c.l.b16 %v1282
    %v1296 = vunpack.c.l.b16 %v1283
    %v1297 = vpack.c.b16 %v1294, %v1293
    %v1298 = vpack.c.b16 %v1296, %v1295
    %v1302 = vsel %vm160, %v1278, 0
    %1304 = vmatpush.bf16.msra.mxu0 0
    %1305 = vmatpush.bf16.msra.mxu0 0
    %1306 = vmatpush.bf16.msra.mxu0 0
    %1307 = vmatpush.bf16.msra.mxu0 0
    %1308 = vmatpush.bf16.msra.mxu0 0
    %1309 = vmatpush.bf16.msra.mxu0 0
    %1310 = vmatpush.bf16.msra.mxu0 %v1298
    %1311 = vmatpush.bf16.msra.mxu0 %v1297
    %1312 = vmatmul.bf16.gmra.mxu0 %v1302
    %v1313 = vpop.f32.mrf.mxu0
    %v1314 = vadd.f32 %v1287, %v1313
    %v1315 = vpop.f32.mrf.mxu0
    %v1316 = vadd.f32 %v1287, %v1315
    %1317 = vdwg.mxu0
    %v1318 = vmul.f32 %v1314, 0.5
    %v1319 = vmul.f32 %v1316, 0.5
    %v1320 = vmul.f32 %v1314, 0.70710677
    %v1321 = vmul.f32 %v1316, 0.70710677
    %v1322 = vmul.f32 %v1320, %v1320
    %v1323 = vmin.f32 16.0, %v1322
    %v1324 = vmul.f32 %v1323, 2.1237322e-06
    %v1325 = vadd.f32 %v1324, 0.00028619796
    %v1326 = vmul.f32 %v1323, %v1325
    %v1327 = vadd.f32 %v1326, 0.0036580483
    %v1328 = vmul.f32 %v1323, %v1327
    %v1329 = vadd.f32 %v1328, 0.05243302
    %v1330 = vmul.f32 %v1323, %v1329
    %v1331 = vadd.f32 %v1330, 0.18741608
    %v1332 = vmul.f32 %v1323, %v1331
    %v1333 = vadd.f32 %v1332, 1.1283791
    %v1334 = vmul.f32 %v1320, %v1333
    %v1335 = vmul.f32 %v1323, 3.8918573e-05
    %v1336 = vadd.f32 %v1335, 0.001143296
    %v1337 = vmul.f32 %v1323, %v1336
    %v1338 = vadd.f32 %v1337, 0.014752088
    %v1339 = vmul.f32 %v1323, %v1338
    %v1340 = vadd.f32 %v1339, 0.112945676
    %v1341 = vmul.f32 %v1323, %v1340
    %v1342 = vadd.f32 %v1341, 0.4994258
    %v1343 = vmul.f32 %v1323, %v1342
    %v1344 = vadd.f32 %v1343, 1.0
    %v1345 = vrcp.pop %v1344
    %v1346 = vmul.f32 %v1344, %v1345
    %v1347 = vsub.f32 1.0, %v1346
    %v1348 = vmul.f32 %v1345, %v1347
    %v1349 = vadd.f32 %v1345, %v1348
    %vm1350 = vweird.f32 %v1344
    %vm1351 = vweird.f32 %v1345
    %vm1352 = vmor %vm1350, %vm1351
    %v1353 = vsel %vm1352, %v1345, %v1349
    %v1354 = vand.u32 2147483647, %v1344
    %vm1355 = vcmp.eq.f32.partialorder %v1354, 8.507059e+37
    %v1356 = vand.u32 %v1344, 2147483648
    %v1357 = vor.u32 1.1754944e-38, %v1356
    %v1358 = vsel %vm1355, %v1357, %v1353
    %v1359 = vmul.f32 %v1334, %v1358
    %v1360 = vmin.f32 %v1359, 1.0
    %v1361 = vmax.f32 %v1360, -1.0
    %v1362 = vmul.f32 %v1321, %v1321
    %v1363 = vmin.f32 16.0, %v1362
    %v1364 = vmul.f32 %v1363, 2.1237322e-06
    %v1365 = vadd.f32 %v1364, 0.00028619796
    %v1366 = vmul.f32 %v1363, %v1365
    %v1367 = vadd.f32 %v1366, 0.0036580483
    %v1368 = vmul.f32 %v1363, %v1367
    %v1369 = vadd.f32 %v1368, 0.05243302
    %v1370 = vmul.f32 %v1363, %v1369
    %v1371 = vadd.f32 %v1370, 0.18741608
    %v1372 = vmul.f32 %v1363, %v1371
    %v1373 = vadd.f32 %v1372, 1.1283791
    %v1374 = vmul.f32 %v1321, %v1373
    %v1375 = vmul.f32 %v1363, 3.8918573e-05
    %v1376 = vadd.f32 %v1375, 0.001143296
    %v1377 = vmul.f32 %v1363, %v1376
    %v1378 = vadd.f32 %v1377, 0.014752088
    %v1379 = vmul.f32 %v1363, %v1378
    %v1380 = vadd.f32 %v1379, 0.112945676
    %v1381 = vmul.f32 %v1363, %v1380
    %v1382 = vadd.f32 %v1381, 0.4994258
    %v1383 = vmul.f32 %v1363, %v1382
    %v1384 = vadd.f32 %v1383, 1.0
    %v1385 = vrcp.pop %v1384
    %v1386 = vmul.f32 %v1384, %v1385
    %v1387 = vsub.f32 1.0, %v1386
    %v1388 = vmul.f32 %v1385, %v1387
    %v1389 = vadd.f32 %v1385, %v1388
    %vm1390 = vweird.f32 %v1384
    %vm1391 = vweird.f32 %v1385
    %vm1392 = vmor %vm1390, %vm1391
    %v1393 = vsel %vm1392, %v1385, %v1389
    %v1394 = vand.u32 2147483647, %v1384
    %vm1395 = vcmp.eq.f32.partialorder %v1394, 8.507059e+37
    %v1396 = vand.u32 %v1384, 2147483648
    %v1397 = vor.u32 1.1754944e-38, %v1396
    %v1398 = vsel %vm1395, %v1397, %v1393
    %v1399 = vmul.f32 %v1374, %v1398
    %v1400 = vmin.f32 %v1399, 1.0
    %v1401 = vmax.f32 %v1400, -1.0
    %v1402 = vadd.f32 %v1361, 1.0
    %v1403 = vadd.f32 %v1401, 1.0
    %v1404 = vmul.f32 %v1318, %v1402
    %v1405 = vmul.f32 %v1319, %v1403
    %v1406 = vpack.c.bf16 %v1405, %v1404
    %s1407 = scalar_lea.vmem %s20, 32
    %v1408 = vld [vmem:[%s1407] sm:$0xf]
    %v1409 = vld [vmem:[%s1407 + $0x4] sm:$0xf]
    %v1410 = vld [vmem:[%s1407 + $0x8] sm:$0xf]
    %v1411 = vld [vmem:[%s1407 + $0xc] sm:$0xf]
    %v1412 = vld [vmem:[%s1407 + $0x10] sm:$0xf]
    %v1413 = vld [vmem:[%s1407 + $0x14] sm:$0xf]
    %v1414 = vld [vmem:[%s1407 + $0x18] sm:$0xf]
    %v1415 = vld [vmem:[%s1407 + $0x1c] sm:$0xf]
    %s1416 = scalar_lea.vmem %s21, 1
    %v1417 = vld [vmem:[%s1416] sm:$0x1]
    %v1419 = vperm.slane %v1417, 0
    %v1429 = vunpack.c.l.b16 %v1408
    %v1430 = vunpack.c.l.b16 %v1409
    %v1431 = vunpack.c.l.b16 %v1410
    %v1432 = vunpack.c.l.b16 %v1411
    %v1433 = vunpack.c.l.b16 %v1412
    %v1434 = vunpack.c.l.b16 %v1413
    %v1435 = vunpack.c.l.b16 %v1414
    %v1436 = vunpack.c.l.b16 %v1415
    %v1437 = vpack.c.b16 %v1430, %v1429
    %v1438 = vpack.c.b16 %v1432, %v1431
    %v1439 = vpack.c.b16 %v1434, %v1433
    %v1440 = vpack.c.b16 %v1436, %v1435
    %v1446 = vsel %vm794, %v1406, 0
    %1448 = vmatpush.bf16.msra.mxu0 0
    %1449 = vmatpush.bf16.msra.mxu0 0
    %1450 = vmatpush.bf16.msra.mxu0 0
    %1451 = vmatpush.bf16.msra.mxu0 0
    %1452 = vmatpush.bf16.msra.mxu0 %v1440
    %1453 = vmatpush.bf16.msra.mxu0 %v1439
    %1454 = vmatpush.bf16.msra.mxu0 %v1438
    %1455 = vmatpush.bf16.msra.mxu0 %v1437
    %1456 = vmatmul.bf16.gmra.mxu0 %v1446
    %v1457 = vpop.f32.mrf.mxu0
    %v1458 = vadd.f32 %v1419, %v1457
    %v1459 = vpop.f32.mrf.mxu0
    %v1460 = vadd.f32 %v1419, %v1459
    %1461 = vdwg.mxu0
    %v1462 = vadd.f32 %v1458, %v1276
    %v1463 = vadd.f32 %v1460, %v1277
    %s1464 = scalar_lea.vmem %s22, 1
    %v1465 = vld [vmem:[%s1464] sm:$0x1]
    %s1466 = scalar_lea.vmem %s23, 1
    %v1467 = vld [vmem:[%s1466] sm:$0x1]
    %v1468 = vsel %vm160, %v1462, 0.0
    %1469 = vadd.xlane.f32.xlu0 %v1468
    %v1470 = vpop.xlane.xlu0 %1469
    %v1471 = vsel %vm160, %v1463, 0.0
    %1472 = vadd.xlane.f32.xlu0 %v1471
    %v1473 = vpop.xlane.xlu0 %1472
    %v1474 = vmul.f32 %v1470, %v173
    %v1475 = vmul.f32 %v1473, %v173
    %v1476 = vsub.f32 %v1462, %v1474
    %v1477 = vsub.f32 %v1463, %v1475
    %v1478 = vmul.f32 %v1476, %v1476
    %v1479 = vmul.f32 %v1477, %v1477
    %v1480 = vsel %vm160, %v1478, 0.0
    %1481 = vadd.xlane.f32.xlu0 %v1480
    %v1482 = vpop.xlane.xlu0 %1481
    %v1483 = vsel %vm160, %v1479, 0.0
    %1484 = vadd.xlane.f32.xlu0 %v1483
    %v1485 = vpop.xlane.xlu0 %1484
    %v1486 = vmul.f32 %v1482, %v173
    %v1487 = vmul.f32 %v1485, %v173
    %v1488 = vadd.f32 %v1486, 1e-12
    %v1489 = vadd.f32 %v1487, 1e-12
    %v1490 = vrsqrt.pop %v1488
    %v1491 = vmul.f32 %v1490, %v1488
    %v1492 = vmul.f32 %v1491, %v1490
    %v1493 = vmul.f32 0.5, %v1492
    %v1494 = vsub.f32 1.5, %v1493
    %v1495 = vmul.f32 %v1490, %v1494
    %vm1496 = vweird.f32 %v1488
    %vm1497 = vweird.f32 %v1490
    %vm1498 = vmor %vm1496, %vm1497
    %v1499 = vsel %vm1498, %v1490, %v1495
    %v1500 = vrsqrt.pop %v1489
    %v1501 = vmul.f32 %v1500, %v1489
    %v1502 = vmul.f32 %v1501, %v1500
    %v1503 = vmul.f32 0.5, %v1502
    %v1504 = vsub.f32 1.5, %v1503
    %v1505 = vmul.f32 %v1500, %v1504
    %vm1506 = vweird.f32 %v1489
    %vm1507 = vweird.f32 %v1500
    %vm1508 = vmor %vm1506, %vm1507
    %v1509 = vsel %vm1508, %v1500, %v1505
    %v1510 = vmul.f32 %v1476, %v1499
    %v1511 = vmul.f32 %v1477, %v1509
    %v1513 = vperm.slane %v1465, 0
    %v1515 = vmul.f32 %v1510, %v1513
    %v1516 = vmul.f32 %v1511, %v1513
    %v1518 = vperm.slane %v1467, 0
    %v1520 = vadd.f32 %v1515, %v1518
    %v1521 = vadd.f32 %v1516, %v1518
    %v1523 = vrot.slane %v1521, 7
    %v1525 = vsel %vm140, %v1520, %v1523
    %v1526 = vpack.c.bf16 %v1525, %v1525
    %v1527 = vld [vmem:[%s24] sm:$0xf]
    %v1528 = vld [vmem:[%s24 + $0x4] sm:$0xf]
    %v1529 = vld [vmem:[%s24 + $0x8] sm:$0xf]
    %v1530 = vld [vmem:[%s24 + $0xc] sm:$0xf]
    %v1531 = vld [vmem:[%s25] sm:$0x1]
    %v1533 = vperm.slane %v1531, 0
    %v1539 = vunpack.c.l.b16 %v1527
    %v1540 = vunpack.c.l.b16 %v1528
    %v1541 = vunpack.c.l.b16 %v1529
    %v1542 = vunpack.c.l.b16 %v1530
    %v1543 = vpack.c.b16 %v1540, %v1539
    %v1544 = vpack.c.b16 %v1542, %v1541
    %v1548 = vsel %vm160, %v1526, 0
    %1550 = vmatpush.bf16.msra.mxu0 0
    %1551 = vmatpush.bf16.msra.mxu0 0
    %1552 = vmatpush.bf16.msra.mxu0 0
    %1553 = vmatpush.bf16.msra.mxu0 0
    %1554 = vmatpush.bf16.msra.mxu0 0
    %1555 = vmatpush.bf16.msra.mxu0 0
    %1556 = vmatpush.bf16.msra.mxu0 %v1544
    %1557 = vmatpush.bf16.msra.mxu0 %v1543
    %1558 = vmatmul.bf16.gmra.mxu0 %v1548
    %v1559 = vpop.f32.mrf.mxu0
    %v1560 = vadd.f32 %v1533, %v1559
    %v1561 = vpop.f32.mrf.mxu0
    %1562 = vdwg.mxu0
    %v1563 = vtanh.pop %v1560
    %v1564 = vpack.c.bf16 %v1563, %v1563
    %v1565 = vld [vmem:[%s26] sm:$0xf]
    %v1566 = vld [vmem:[%s26 + $0x4] sm:$0xf]
    %v1567 = vld [vmem:[%s26 + $0x8] sm:$0xf]
    %v1568 = vld [vmem:[%s26 + $0xc] sm:$0xf]
    %v1569 = vld [vmem:[%s27] sm:$0x1]
    %v1571 = vperm.slane %v1569, 0
    %v1577 = vunpack.c.l.b16 %v1565
    %v1578 = vunpack.c.l.b16 %v1566
    %v1579 = vunpack.c.l.b16 %v1567
    %v1580 = vunpack.c.l.b16 %v1568
    %v1581 = vpack.c.b16 %v1578, %v1577
    %v1582 = vpack.c.b16 %v1580, %v1579
    %v1586 = vsel %vm160, %v1564, 0
    %1588 = vmatpush.bf16.msra.mxu0 0
    %1589 = vmatpush.bf16.msra.mxu0 0
    %1590 = vmatpush.bf16.msra.mxu0 0
    %1591 = vmatpush.bf16.msra.mxu0 0
    %1592 = vmatpush.bf16.msra.mxu0 0
    %1593 = vmatpush.bf16.msra.mxu0 0
    %1594 = vmatpush.bf16.msra.mxu0 %v1582
    %1595 = vmatpush.bf16.msra.mxu0 %v1581
    %1596 = vmatmul.bf16.gmra.mxu0 %v1586
    %v1597 = vpop.f32.mrf.mxu0
    %v1598 = vadd.f32 %v1571, %v1597
    %v1599 = vpop.f32.mrf.mxu0
    %1600 = vdwg.mxu0
    %1601 = vst [vmem:[#allocation2] sm:$0x3] %v1598
    // Predicated region
    $region114: #{custom_bert_forward.1} parent=1 // pred_check
      _
    $region115: #{custom_bert_forward.1} parent=1 // pred_check_branch
      %1603 = sbr.rel (0) target = $region117
    $region116: #{custom_bert_forward.1} parent=1 // pred_region
      %1605 = vsyncadd [#allocation3], 0
      %s1607 = sshll.u32 [#allocation2], 4
      %s1608 = int_to_ptr.vmem [resolvable:$true] %s1607
      %s1609 = sshll.u32 %s28, 4
      %s1610 = int_to_ptr.hbm [resolvable:$true] %s1609
      %1612 = dma.vmem_to_hbm [thread:$0]  %s1608, 32, %s1610, [#allocation3]
    $region117: #{custom_bert_forward.1} parent=1 // pred_fallthru
      _
    // Predicated region
    $region118: #{custom_bert_forward.1} parent=1 // pred_check
      _
    $region119: #{custom_bert_forward.1} parent=1 // pred_check_branch
      %1614 = sbr.rel (0) target = $region121
    $region120: #{custom_bert_forward.1} parent=1 // pred_region
      %1616 = dma.done [#allocation3], 32
    $region121: #{custom_bert_forward.1} parent=1 // pred_fallthru
      _
    %1617 = vsyncpa [#allocation3], 1

</llo_original>
